<compile_context>
chip_gen: v7x
topology: tpu7x:2x2x1
jax: 0.10.0
libtpu: 0.0.40
codegen_flags: <defaults>
</compile_context>

<pallas_src>
import jax
import jax.numpy as jnp
from jax.experimental import pallas as pl
from jax.experimental.pallas import tpu as pltpu

EPS = 1e-5   # BatchNorm2d default eps
KH = KW = 5  # conv kernel
POOL = 5     # MaxPool2d(5), stride 5
C_OUT = 16

# TODO(synk): BatchNorm2d is implemented in eval mode (running stats folded into a
# per-channel scale/shift); training-mode batch statistics are not computed.


def _vmem():
    return pl.BlockSpec(memory_space=pltpu.MemorySpace.VMEM)


# ------------- fused kernel: conv+BN+ReLU+maxpool+fc1+fc2, all in VMEM -------------
def fused_cnn_kernel(patches_ref, wblk_ref, shift_ref, w1p_ref, b1_ref,
                     w2t_ref, b2_ref, o_ref):
    """Whole forward pass, VMEM resident.

    patches_ref: (25, N, cells*25)        im2col LHS, one slab per pool-window pos
    wblk_ref:    (cells*25, cells*16)     block-diag conv weights, BN scale folded
    shift_ref:   (1, cells*16)            folded conv-bias / BN shift (per cell,ch)
    w1p_ref:     (cells*16, 512)          fc1 weights with NCHW flatten folded in
    b1_ref:      (1, 512)
    w2t_ref:     (512, 11), b2_ref: (1, 11)
    o_ref:       (N, 11)                  logits
    """
    n_win = patches_ref.shape[0]          # 25 positions inside each 5x5 pool cell
    wblk = wblk_ref[...]                  # read once; same RHS reused for 25 dots

    # conv as im2col matmul (block-diagonal weights -> output columns are already
    # (cell, channel) ordered), fused with the 5x5/stride-5 max pool as a running
    # max over the 25 window-position slabs.
    m = jnp.dot(patches_ref[0], wblk, preferred_element_type=jnp.float32)  # (N,160)
    for g in range(1, n_win):
        m = jnp.maximum(
            m, jnp.dot(patches_ref[g], wblk, preferred_element_type=jnp.float32))

    # per-(cell,channel) shift + ReLU once, after the max (constant add commutes
    # with max; ReLU is monotonic) -> pooled activations, (N, cells*16).
    h = jnp.maximum(m + shift_ref[...], 0.0)

    # fc1 as a single matmul (flatten permutation folded into w1p), then fc2.
    h = jnp.dot(h, w1p_ref[...], preferred_element_type=jnp.float32) + b1_ref[...]
    o_ref[...] = jnp.dot(h, w2t_ref[...],
                         preferred_element_type=jnp.float32) + b2_ref[...]


# ------------- wrapper-side layout prep (tiny, XLA-fused, weight-only where possible) -------------
def _build_patches(x):
    """x: (N,1,H,W) -> (25, N, PH*PW*25) im2col LHS.

    Leading axis g = pi*5+pj is the position inside the 5x5 pool window; rows are
    images; the trailing axis is (cell, conv-tap) flattened as cell*25 + k with
    cell = ph*PW + pw and k = di*5 + dj.  ~50 KB of slices/stack that XLA fuses;
    all heavy work happens inside the single Pallas kernel.
    """
    N, _, H, W = x.shape
    PH, PW = H // POOL, W // POOL
    xp = jnp.pad(x[:, 0], ((0, 0), (2, 2), (2, 2)))             # (N, H+4, W+4)
    cols = [xp[:, di:di + H, dj:dj + W] for di in range(KH) for dj in range(KW)]
    p = jnp.stack(cols, axis=-1)                                # (N, H, W, 25)
    p = p.reshape(N, PH, POOL, PW, POOL, KH * KW)               # (n, ph, pi, pw, pj, k)
    p = p.transpose(2, 4, 0, 1, 3, 5)                           # (pi, pj, n, ph, pw, k)
    return p.reshape(POOL * POOL, N, PH * PW * KH * KW)


def cnn_forward(x, params):
    N, _, H, W = x.shape
    PH, PW = H // POOL, W // POOL
    n_cell = PH * PW

    w_conv, b_conv = params["conv_w"], params["conv_b"]
    gamma, beta = params["bn_gamma"], params["bn_beta"]
    mean, var = params["bn_mean"], params["bn_var"]
    w1, b1, w2, b2 = params["fc1_w"], params["fc1_b"], params["fc2_w"], params["fc2_b"]

    # weight-only folding (no per-forward activation work):
    scale = gamma / jnp.sqrt(var + EPS)                          # (16,)
    shift = beta + (b_conv - mean) * scale                       # (16,)
    wm = w_conv.reshape(C_OUT, KH * KW).T * scale[None, :]       # (25,16), BN scale folded
    wblk = jnp.kron(jnp.eye(n_cell, dtype=wm.dtype), wm)         # (cells*25, cells*16)
    shift_full = jnp.tile(shift, n_cell).reshape(1, n_cell * C_OUT)
    # fc1 weights permuted so the NCHW flatten (c*n_cell + cell) is absorbed:
    #   w1p[cell*16 + c, j] = fc1_w[j, c*n_cell + cell]
    w1p = w1.reshape(w1.shape[0], C_OUT, n_cell).transpose(2, 1, 0) \
            .reshape(n_cell * C_OUT, w1.shape[0])                # (160, 512)

    patches = _build_patches(x)                                  # (25, N, cells*25)

    out = pl.pallas_call(
        fused_cnn_kernel,
        out_shape=jax.ShapeDtypeStruct((N, w2.shape[0]), jnp.float32),
        in_specs=[_vmem()] * 7,
        out_specs=_vmem(),
    )(patches, wblk, shift_full, w1p, b1.reshape(1, -1), w2.T, b2.reshape(1, -1))
    return out


# ------------- pure-JAX reference (same math, XLA ops) for verification -------------
def cnn_reference(x, params):
    N = x.shape[0]
    y = jax.lax.conv_general_dilated(
        x, params["conv_w"], window_strides=(1, 1), padding=((2, 2), (2, 2)),
        dimension_numbers=("NCHW", "OIHW", "NCHW"))
    y = y + params["conv_b"].reshape(1, 16, 1, 1)
    y = (y - params["bn_mean"].reshape(1, 16, 1, 1)) / jnp.sqrt(
        params["bn_var"].reshape(1, 16, 1, 1) + EPS)
    y = y * params["bn_gamma"].reshape(1, 16, 1, 1) + params["bn_beta"].reshape(1, 16, 1, 1)
    y = jnp.maximum(y, 0.0)
    y = jax.lax.reduce_window(y, -jnp.inf, jax.lax.max, (1, 1, 5, 5), (1, 1, 5, 5), "VALID")
    y = y.reshape(N, -1)
    y = y @ params["fc1_w"].T + params["fc1_b"]
    y = y @ params["fc2_w"].T + params["fc2_b"]
    return y


def init_params(key):
    ks = jax.random.split(key, 8)
    p = {}
    p["conv_w"] = 0.2 * jax.random.normal(ks[0], (16, 1, 5, 5), jnp.float32)
    p["conv_b"] = 0.1 * jax.random.normal(ks[1], (16,), jnp.float32)
    p["bn_gamma"] = 1.0 + 0.1 * jax.random.normal(ks[2], (16,), jnp.float32)
    p["bn_beta"] = 0.1 * jax.random.normal(ks[3], (16,), jnp.float32)
    p["bn_mean"] = 0.05 * jax.random.normal(ks[4], (16,), jnp.float32)
    p["bn_var"] = jnp.abs(1.0 + 0.1 * jax.random.normal(ks[5], (16,), jnp.float32))
    p["fc1_w"] = jax.random.normal(ks[6], (512, 160), jnp.float32) / jnp.sqrt(160.0)
    p["fc1_b"] = jnp.linspace(-0.1, 0.1, 512, dtype=jnp.float32)
    p["fc2_w"] = jax.random.normal(ks[7], (11, 512), jnp.float32) / jnp.sqrt(512.0)
    p["fc2_b"] = jnp.linspace(-0.05, 0.05, 11, dtype=jnp.float32)
    return p


if __name__ == "__main__":
    key = jax.random.PRNGKey(0)
    k_x, k_p = jax.random.split(key)
    # input consistent with Linear(160, 512): (N, 1, 10, 25) -> pool(5) -> 16*2*5 = 160
    x = jax.random.normal(k_x, (2, 1, 10, 25), jnp.float32)
    params = init_params(k_p)

    fwd = jax.jit(cnn_forward)
    out = jax.block_until_ready(fwd(x, params))
    ref = jax.block_until_ready(cnn_reference(x, params))

    assert out.shape == (2, 11) and out.dtype == jnp.float32
    assert jnp.allclose(out, ref, atol=1e-4, rtol=1e-4), (out, ref)
    print("KERNEL_OK")
</pallas_src>

<mosaic_0001>
module attributes {stable_mosaic.version = 11 : i64} {
  func.func @fused_cnn_kernel(%arg0: memref<25x2x250xf32, #tpu.memory_space<vmem>>, %arg1: memref<250x160xf32, #tpu.memory_space<vmem>>, %arg2: memref<1x160xf32, #tpu.memory_space<vmem>>, %arg3: memref<160x512xf32, #tpu.memory_space<vmem>>, %arg4: memref<1x512xf32, #tpu.memory_space<vmem>>, %arg5: memref<512x11xf32, #tpu.memory_space<vmem>>, %arg6: memref<1x11xf32, #tpu.memory_space<vmem>>, %arg7: memref<2x11xf32, #tpu.memory_space<vmem>>) attributes {dimension_semantics = [], scalar_prefetch = 0 : i64, scratch_operands = 0 : i64, tpu.core_type = #tpu.core_type<tc>} {
    %c0 = arith.constant 0 : index
    %c0_0 = arith.constant 0 : index
    %0 = vector.load %arg1[%c0, %c0_0] : memref<250x160xf32, #tpu.memory_space<vmem>>, vector<250x160xf32>
    %c0_1 = arith.constant 0 : index
    %c0_2 = arith.constant 0 : index
    %c0_3 = arith.constant 0 : index
    %1 = vector.load %arg0[%c0_1, %c0_2, %c0_3] : memref<25x2x250xf32, #tpu.memory_space<vmem>>, vector<1x2x250xf32>
    %2 = vector.shape_cast %1 : vector<1x2x250xf32> to vector<2x250xf32>
    %cst = arith.constant dense<0.000000e+00> : vector<2x160xf32>
    %3 = tpu.matmul %2, %0, %cst {dimension_numbers = #tpu.dot_dimension_numbers<[1], [0], [0], [1], [0, 0, 1, 1], [], []>} : vector<2x250xf32>, vector<250x160xf32>, vector<2x160xf32> -> vector<2x160xf32>
    %c1 = arith.constant 1 : index
    %c0_4 = arith.constant 0 : index
    %c0_5 = arith.constant 0 : index
    %4 = vector.load %arg0[%c1, %c0_4, %c0_5] : memref<25x2x250xf32, #tpu.memory_space<vmem>>, vector<1x2x250xf32>
    %5 = vector.shape_cast %4 : vector<1x2x250xf32> to vector<2x250xf32>
    %cst_6 = arith.constant dense<0.000000e+00> : vector<2x160xf32>
    %6 = tpu.matmul %5, %0, %cst_6 {dimension_numbers = #tpu.dot_dimension_numbers<[1], [0], [0], [1], [0, 0, 1, 1], [], []>} : vector<2x250xf32>, vector<250x160xf32>, vector<2x160xf32> -> vector<2x160xf32>
    %7 = arith.maximumf %3, %6 : vector<2x160xf32>
    %c2 = arith.constant 2 : index
    %c0_7 = arith.constant 0 : index
    %c0_8 = arith.constant 0 : index
    %8 = vector.load %arg0[%c2, %c0_7, %c0_8] : memref<25x2x250xf32, #tpu.memory_space<vmem>>, vector<1x2x250xf32>
    %9 = vector.shape_cast %8 : vector<1x2x250xf32> to vector<2x250xf32>
    %cst_9 = arith.constant dense<0.000000e+00> : vector<2x160xf32>
    %10 = tpu.matmul %9, %0, %cst_9 {dimension_numbers = #tpu.dot_dimension_numbers<[1], [0], [0], [1], [0, 0, 1, 1], [], []>} : vector<2x250xf32>, vector<250x160xf32>, vector<2x160xf32> -> vector<2x160xf32>
    %11 = arith.maximumf %7, %10 : vector<2x160xf32>
    %c3 = arith.constant 3 : index
    %c0_10 = arith.constant 0 : index
    %c0_11 = arith.constant 0 : index
    %12 = vector.load %arg0[%c3, %c0_10, %c0_11] : memref<25x2x250xf32, #tpu.memory_space<vmem>>, vector<1x2x250xf32>
    %13 = vector.shape_cast %12 : vector<1x2x250xf32> to vector<2x250xf32>
    %cst_12 = arith.constant dense<0.000000e+00> : vector<2x160xf32>
    %14 = tpu.matmul %13, %0, %cst_12 {dimension_numbers = #tpu.dot_dimension_numbers<[1], [0], [0], [1], [0, 0, 1, 1], [], []>} : vector<2x250xf32>, vector<250x160xf32>, vector<2x160xf32> -> vector<2x160xf32>
    %15 = arith.maximumf %11, %14 : vector<2x160xf32>
    %c4 = arith.constant 4 : index
    %c0_13 = arith.constant 0 : index
    %c0_14 = arith.constant 0 : index
    %16 = vector.load %arg0[%c4, %c0_13, %c0_14] : memref<25x2x250xf32, #tpu.memory_space<vmem>>, vector<1x2x250xf32>
    %17 = vector.shape_cast %16 : vector<1x2x250xf32> to vector<2x250xf32>
    %cst_15 = arith.constant dense<0.000000e+00> : vector<2x160xf32>
    %18 = tpu.matmul %17, %0, %cst_15 {dimension_numbers = #tpu.dot_dimension_numbers<[1], [0], [0], [1], [0, 0, 1, 1], [], []>} : vector<2x250xf32>, vector<250x160xf32>, vector<2x160xf32> -> vector<2x160xf32>
    %19 = arith.maximumf %15, %18 : vector<2x160xf32>
    %c5 = arith.constant 5 : index
    %c0_16 = arith.constant 0 : index
    %c0_17 = arith.constant 0 : index
    %20 = vector.load %arg0[%c5, %c0_16, %c0_17] : memref<25x2x250xf32, #tpu.memory_space<vmem>>, vector<1x2x250xf32>
    %21 = vector.shape_cast %20 : vector<1x2x250xf32> to vector<2x250xf32>
    %cst_18 = arith.constant dense<0.000000e+00> : vector<2x160xf32>
    %22 = tpu.matmul %21, %0, %cst_18 {dimension_numbers = #tpu.dot_dimension_numbers<[1], [0], [0], [1], [0, 0, 1, 1], [], []>} : vector<2x250xf32>, vector<250x160xf32>, vector<2x160xf32> -> vector<2x160xf32>
    %23 = arith.maximumf %19, %22 : vector<2x160xf32>
    %c6 = arith.constant 6 : index
    %c0_19 = arith.constant 0 : index
    %c0_20 = arith.constant 0 : index
    %24 = vector.load %arg0[%c6, %c0_19, %c0_20] : memref<25x2x250xf32, #tpu.memory_space<vmem>>, vector<1x2x250xf32>
    %25 = vector.shape_cast %24 : vector<1x2x250xf32> to vector<2x250xf32>
    %cst_21 = arith.constant dense<0.000000e+00> : vector<2x160xf32>
    %26 = tpu.matmul %25, %0, %cst_21 {dimension_numbers = #tpu.dot_dimension_numbers<[1], [0], [0], [1], [0, 0, 1, 1], [], []>} : vector<2x250xf32>, vector<250x160xf32>, vector<2x160xf32> -> vector<2x160xf32>
    %27 = arith.maximumf %23, %26 : vector<2x160xf32>
    %c7 = arith.constant 7 : index
    %c0_22 = arith.constant 0 : index
    %c0_23 = arith.constant 0 : index
    %28 = vector.load %arg0[%c7, %c0_22, %c0_23] : memref<25x2x250xf32, #tpu.memory_space<vmem>>, vector<1x2x250xf32>
    %29 = vector.shape_cast %28 : vector<1x2x250xf32> to vector<2x250xf32>
    %cst_24 = arith.constant dense<0.000000e+00> : vector<2x160xf32>
    %30 = tpu.matmul %29, %0, %cst_24 {dimension_numbers = #tpu.dot_dimension_numbers<[1], [0], [0], [1], [0, 0, 1, 1], [], []>} : vector<2x250xf32>, vector<250x160xf32>, vector<2x160xf32> -> vector<2x160xf32>
    %31 = arith.maximumf %27, %30 : vector<2x160xf32>
    %c8 = arith.constant 8 : index
    %c0_25 = arith.constant 0 : index
    %c0_26 = arith.constant 0 : index
    %32 = vector.load %arg0[%c8, %c0_25, %c0_26] : memref<25x2x250xf32, #tpu.memory_space<vmem>>, vector<1x2x250xf32>
    %33 = vector.shape_cast %32 : vector<1x2x250xf32> to vector<2x250xf32>
    %cst_27 = arith.constant dense<0.000000e+00> : vector<2x160xf32>
    %34 = tpu.matmul %33, %0, %cst_27 {dimension_numbers = #tpu.dot_dimension_numbers<[1], [0], [0], [1], [0, 0, 1, 1], [], []>} : vector<2x250xf32>, vector<250x160xf32>, vector<2x160xf32> -> vector<2x160xf32>
    %35 = arith.maximumf %31, %34 : vector<2x160xf32>
    %c9 = arith.constant 9 : index
    %c0_28 = arith.constant 0 : index
    %c0_29 = arith.constant 0 : index
    %36 = vector.load %arg0[%c9, %c0_28, %c0_29] : memref<25x2x250xf32, #tpu.memory_space<vmem>>, vector<1x2x250xf32>
    %37 = vector.shape_cast %36 : vector<1x2x250xf32> to vector<2x250xf32>
    %cst_30 = arith.constant dense<0.000000e+00> : vector<2x160xf32>
    %38 = tpu.matmul %37, %0, %cst_30 {dimension_numbers = #tpu.dot_dimension_numbers<[1], [0], [0], [1], [0, 0, 1, 1], [], []>} : vector<2x250xf32>, vector<250x160xf32>, vector<2x160xf32> -> vector<2x160xf32>
    %39 = arith.maximumf %35, %38 : vector<2x160xf32>
    %c10 = arith.constant 10 : index
    %c0_31 = arith.constant 0 : index
    %c0_32 = arith.constant 0 : index
    %40 = vector.load %arg0[%c10, %c0_31, %c0_32] : memref<25x2x250xf32, #tpu.memory_space<vmem>>, vector<1x2x250xf32>
    %41 = vector.shape_cast %40 : vector<1x2x250xf32> to vector<2x250xf32>
    %cst_33 = arith.constant dense<0.000000e+00> : vector<2x160xf32>
    %42 = tpu.matmul %41, %0, %cst_33 {dimension_numbers = #tpu.dot_dimension_numbers<[1], [0], [0], [1], [0, 0, 1, 1], [], []>} : vector<2x250xf32>, vector<250x160xf32>, vector<2x160xf32> -> vector<2x160xf32>
    %43 = arith.maximumf %39, %42 : vector<2x160xf32>
    %c11 = arith.constant 11 : index
    %c0_34 = arith.constant 0 : index
    %c0_35 = arith.constant 0 : index
    %44 = vector.load %arg0[%c11, %c0_34, %c0_35] : memref<25x2x250xf32, #tpu.memory_space<vmem>>, vector<1x2x250xf32>
    %45 = vector.shape_cast %44 : vector<1x2x250xf32> to vector<2x250xf32>
    %cst_36 = arith.constant dense<0.000000e+00> : vector<2x160xf32>
    %46 = tpu.matmul %45, %0, %cst_36 {dimension_numbers = #tpu.dot_dimension_numbers<[1], [0], [0], [1], [0, 0, 1, 1], [], []>} : vector<2x250xf32>, vector<250x160xf32>, vector<2x160xf32> -> vector<2x160xf32>
    %47 = arith.maximumf %43, %46 : vector<2x160xf32>
    %c12 = arith.constant 12 : index
    %c0_37 = arith.constant 0 : index
    %c0_38 = arith.constant 0 : index
    %48 = vector.load %arg0[%c12, %c0_37, %c0_38] : memref<25x2x250xf32, #tpu.memory_space<vmem>>, vector<1x2x250xf32>
    %49 = vector.shape_cast %48 : vector<1x2x250xf32> to vector<2x250xf32>
    %cst_39 = arith.constant dense<0.000000e+00> : vector<2x160xf32>
    %50 = tpu.matmul %49, %0, %cst_39 {dimension_numbers = #tpu.dot_dimension_numbers<[1], [0], [0], [1], [0, 0, 1, 1], [], []>} : vector<2x250xf32>, vector<250x160xf32>, vector<2x160xf32> -> vector<2x160xf32>
    %51 = arith.maximumf %47, %50 : vector<2x160xf32>
    %c13 = arith.constant 13 : index
    %c0_40 = arith.constant 0 : index
    %c0_41 = arith.constant 0 : index
    %52 = vector.load %arg0[%c13, %c0_40, %c0_41] : memref<25x2x250xf32, #tpu.memory_space<vmem>>, vector<1x2x250xf32>
    %53 = vector.shape_cast %52 : vector<1x2x250xf32> to vector<2x250xf32>
    %cst_42 = arith.constant dense<0.000000e+00> : vector<2x160xf32>
    %54 = tpu.matmul %53, %0, %cst_42 {dimension_numbers = #tpu.dot_dimension_numbers<[1], [0], [0], [1], [0, 0, 1, 1], [], []>} : vector<2x250xf32>, vector<250x160xf32>, vector<2x160xf32> -> vector<2x160xf32>
    %55 = arith.maximumf %51, %54 : vector<2x160xf32>
    %c14 = arith.constant 14 : index
    %c0_43 = arith.constant 0 : index
    %c0_44 = arith.constant 0 : index
    %56 = vector.load %arg0[%c14, %c0_43, %c0_44] : memref<25x2x250xf32, #tpu.memory_space<vmem>>, vector<1x2x250xf32>
    %57 = vector.shape_cast %56 : vector<1x2x250xf32> to vector<2x250xf32>
    %cst_45 = arith.constant dense<0.000000e+00> : vector<2x160xf32>
    %58 = tpu.matmul %57, %0, %cst_45 {dimension_numbers = #tpu.dot_dimension_numbers<[1], [0], [0], [1], [0, 0, 1, 1], [], []>} : vector<2x250xf32>, vector<250x160xf32>, vector<2x160xf32> -> vector<2x160xf32>
    %59 = arith.maximumf %55, %58 : vector<2x160xf32>
    %c15 = arith.constant 15 : index
    %c0_46 = arith.constant 0 : index
    %c0_47 = arith.constant 0 : index
    %60 = vector.load %arg0[%c15, %c0_46, %c0_47] : memref<25x2x250xf32, #tpu.memory_space<vmem>>, vector<1x2x250xf32>
    %61 = vector.shape_cast %60 : vector<1x2x250xf32> to vector<2x250xf32>
    %cst_48 = arith.constant dense<0.000000e+00> : vector<2x160xf32>
    %62 = tpu.matmul %61, %0, %cst_48 {dimension_numbers = #tpu.dot_dimension_numbers<[1], [0], [0], [1], [0, 0, 1, 1], [], []>} : vector<2x250xf32>, vector<250x160xf32>, vector<2x160xf32> -> vector<2x160xf32>
    %63 = arith.maximumf %59, %62 : vector<2x160xf32>
    %c16 = arith.constant 16 : index
    %c0_49 = arith.constant 0 : index
    %c0_50 = arith.constant 0 : index
    %64 = vector.load %arg0[%c16, %c0_49, %c0_50] : memref<25x2x250xf32, #tpu.memory_space<vmem>>, vector<1x2x250xf32>
    %65 = vector.shape_cast %64 : vector<1x2x250xf32> to vector<2x250xf32>
    %cst_51 = arith.constant dense<0.000000e+00> : vector<2x160xf32>
    %66 = tpu.matmul %65, %0, %cst_51 {dimension_numbers = #tpu.dot_dimension_numbers<[1], [0], [0], [1], [0, 0, 1, 1], [], []>} : vector<2x250xf32>, vector<250x160xf32>, vector<2x160xf32> -> vector<2x160xf32>
    %67 = arith.maximumf %63, %66 : vector<2x160xf32>
    %c17 = arith.constant 17 : index
    %c0_52 = arith.constant 0 : index
    %c0_53 = arith.constant 0 : index
    %68 = vector.load %arg0[%c17, %c0_52, %c0_53] : memref<25x2x250xf32, #tpu.memory_space<vmem>>, vector<1x2x250xf32>
    %69 = vector.shape_cast %68 : vector<1x2x250xf32> to vector<2x250xf32>
    %cst_54 = arith.constant dense<0.000000e+00> : vector<2x160xf32>
    %70 = tpu.matmul %69, %0, %cst_54 {dimension_numbers = #tpu.dot_dimension_numbers<[1], [0], [0], [1], [0, 0, 1, 1], [], []>} : vector<2x250xf32>, vector<250x160xf32>, vector<2x160xf32> -> vector<2x160xf32>
    %71 = arith.maximumf %67, %70 : vector<2x160xf32>
    %c18 = arith.constant 18 : index
    %c0_55 = arith.constant 0 : index
    %c0_56 = arith.constant 0 : index
    %72 = vector.load %arg0[%c18, %c0_55, %c0_56] : memref<25x2x250xf32, #tpu.memory_space<vmem>>, vector<1x2x250xf32>
    %73 = vector.shape_cast %72 : vector<1x2x250xf32> to vector<2x250xf32>
    %cst_57 = arith.constant dense<0.000000e+00> : vector<2x160xf32>
    %74 = tpu.matmul %73, %0, %cst_57 {dimension_numbers = #tpu.dot_dimension_numbers<[1], [0], [0], [1], [0, 0, 1, 1], [], []>} : vector<2x250xf32>, vector<250x160xf32>, vector<2x160xf32> -> vector<2x160xf32>
    %75 = arith.maximumf %71, %74 : vector<2x160xf32>
    %c19 = arith.constant 19 : index
    %c0_58 = arith.constant 0 : index
    %c0_59 = arith.constant 0 : index
    %76 = vector.load %arg0[%c19, %c0_58, %c0_59] : memref<25x2x250xf32, #tpu.memory_space<vmem>>, vector<1x2x250xf32>
    %77 = vector.shape_cast %76 : vector<1x2x250xf32> to vector<2x250xf32>
    %cst_60 = arith.constant dense<0.000000e+00> : vector<2x160xf32>
    %78 = tpu.matmul %77, %0, %cst_60 {dimension_numbers = #tpu.dot_dimension_numbers<[1], [0], [0], [1], [0, 0, 1, 1], [], []>} : vector<2x250xf32>, vector<250x160xf32>, vector<2x160xf32> -> vector<2x160xf32>
    %79 = arith.maximumf %75, %78 : vector<2x160xf32>
    %c20 = arith.constant 20 : index
    %c0_61 = arith.constant 0 : index
    %c0_62 = arith.constant 0 : index
    %80 = vector.load %arg0[%c20, %c0_61, %c0_62] : memref<25x2x250xf32, #tpu.memory_space<vmem>>, vector<1x2x250xf32>
    %81 = vector.shape_cast %80 : vector<1x2x250xf32> to vector<2x250xf32>
    %cst_63 = arith.constant dense<0.000000e+00> : vector<2x160xf32>
    %82 = tpu.matmul %81, %0, %cst_63 {dimension_numbers = #tpu.dot_dimension_numbers<[1], [0], [0], [1], [0, 0, 1, 1], [], []>} : vector<2x250xf32>, vector<250x160xf32>, vector<2x160xf32> -> vector<2x160xf32>
    %83 = arith.maximumf %79, %82 : vector<2x160xf32>
    %c21 = arith.constant 21 : index
    %c0_64 = arith.constant 0 : index
    %c0_65 = arith.constant 0 : index
    %84 = vector.load %arg0[%c21, %c0_64, %c0_65] : memref<25x2x250xf32, #tpu.memory_space<vmem>>, vector<1x2x250xf32>
    %85 = vector.shape_cast %84 : vector<1x2x250xf32> to vector<2x250xf32>
    %cst_66 = arith.constant dense<0.000000e+00> : vector<2x160xf32>
    %86 = tpu.matmul %85, %0, %cst_66 {dimension_numbers = #tpu.dot_dimension_numbers<[1], [0], [0], [1], [0, 0, 1, 1], [], []>} : vector<2x250xf32>, vector<250x160xf32>, vector<2x160xf32> -> vector<2x160xf32>
    %87 = arith.maximumf %83, %86 : vector<2x160xf32>
    %c22 = arith.constant 22 : index
    %c0_67 = arith.constant 0 : index
    %c0_68 = arith.constant 0 : index
    %88 = vector.load %arg0[%c22, %c0_67, %c0_68] : memref<25x2x250xf32, #tpu.memory_space<vmem>>, vector<1x2x250xf32>
    %89 = vector.shape_cast %88 : vector<1x2x250xf32> to vector<2x250xf32>
    %cst_69 = arith.constant dense<0.000000e+00> : vector<2x160xf32>
    %90 = tpu.matmul %89, %0, %cst_69 {dimension_numbers = #tpu.dot_dimension_numbers<[1], [0], [0], [1], [0, 0, 1, 1], [], []>} : vector<2x250xf32>, vector<250x160xf32>, vector<2x160xf32> -> vector<2x160xf32>
    %91 = arith.maximumf %87, %90 : vector<2x160xf32>
    %c23 = arith.constant 23 : index
    %c0_70 = arith.constant 0 : index
    %c0_71 = arith.constant 0 : index
    %92 = vector.load %arg0[%c23, %c0_70, %c0_71] : memref<25x2x250xf32, #tpu.memory_space<vmem>>, vector<1x2x250xf32>
    %93 = vector.shape_cast %92 : vector<1x2x250xf32> to vector<2x250xf32>
    %cst_72 = arith.constant dense<0.000000e+00> : vector<2x160xf32>
    %94 = tpu.matmul %93, %0, %cst_72 {dimension_numbers = #tpu.dot_dimension_numbers<[1], [0], [0], [1], [0, 0, 1, 1], [], []>} : vector<2x250xf32>, vector<250x160xf32>, vector<2x160xf32> -> vector<2x160xf32>
    %95 = arith.maximumf %91, %94 : vector<2x160xf32>
    %c24 = arith.constant 24 : index
    %c0_73 = arith.constant 0 : index
    %c0_74 = arith.constant 0 : index
    %96 = vector.load %arg0[%c24, %c0_73, %c0_74] : memref<25x2x250xf32, #tpu.memory_space<vmem>>, vector<1x2x250xf32>
    %97 = vector.shape_cast %96 : vector<1x2x250xf32> to vector<2x250xf32>
    %cst_75 = arith.constant dense<0.000000e+00> : vector<2x160xf32>
    %98 = tpu.matmul %97, %0, %cst_75 {dimension_numbers = #tpu.dot_dimension_numbers<[1], [0], [0], [1], [0, 0, 1, 1], [], []>} : vector<2x250xf32>, vector<250x160xf32>, vector<2x160xf32> -> vector<2x160xf32>
    %99 = arith.maximumf %95, %98 : vector<2x160xf32>
    %c0_76 = arith.constant 0 : index
    %c0_77 = arith.constant 0 : index
    %100 = vector.load %arg2[%c0_76, %c0_77] : memref<1x160xf32, #tpu.memory_space<vmem>>, vector<1x160xf32>
    %101 = vector.broadcast %100 : vector<1x160xf32> to vector<2x160xf32>
    %102 = arith.addf %99, %101 : vector<2x160xf32>
    %cst_78 = arith.constant 0.000000e+00 : f32
    %103 = vector.broadcast %cst_78 : f32 to vector<2x160xf32>
    %104 = arith.maximumf %102, %103 : vector<2x160xf32>
    %c0_79 = arith.constant 0 : index
    %c0_80 = arith.constant 0 : index
    %105 = vector.load %arg3[%c0_79, %c0_80] : memref<160x512xf32, #tpu.memory_space<vmem>>, vector<160x512xf32>
    %cst_81 = arith.constant dense<0.000000e+00> : vector<2x512xf32>
    %106 = tpu.matmul %104, %105, %cst_81 {dimension_numbers = #tpu.dot_dimension_numbers<[1], [0], [0], [1], [0, 0, 1, 1], [], []>} : vector<2x160xf32>, vector<160x512xf32>, vector<2x512xf32> -> vector<2x512xf32>
    %c0_82 = arith.constant 0 : index
    %c0_83 = arith.constant 0 : index
    %107 = vector.load %arg4[%c0_82, %c0_83] : memref<1x512xf32, #tpu.memory_space<vmem>>, vector<1x512xf32>
    %108 = vector.broadcast %107 : vector<1x512xf32> to vector<2x512xf32>
    %109 = arith.addf %106, %108 : vector<2x512xf32>
    %c0_84 = arith.constant 0 : index
    %c0_85 = arith.constant 0 : index
    %110 = vector.load %arg5[%c0_84, %c0_85] : memref<512x11xf32, #tpu.memory_space<vmem>>, vector<512x11xf32>
    %cst_86 = arith.constant dense<0.000000e+00> : vector<2x11xf32>
    %111 = tpu.matmul %109, %110, %cst_86 {dimension_numbers = #tpu.dot_dimension_numbers<[1], [0], [0], [1], [0, 0, 1, 1], [], []>} : vector<2x512xf32>, vector<512x11xf32>, vector<2x11xf32> -> vector<2x11xf32>
    %c0_87 = arith.constant 0 : index
    %c0_88 = arith.constant 0 : index
    %112 = vector.load %arg6[%c0_87, %c0_88] : memref<1x11xf32, #tpu.memory_space<vmem>>, vector<1x11xf32>
    %113 = vector.broadcast %112 : vector<1x11xf32> to vector<2x11xf32>
    %114 = arith.addf %111, %113 : vector<2x11xf32>
    %c0_89 = arith.constant 0 : index
    %c0_90 = arith.constant 0 : index
    %115 = vector.load %arg7[%c0_89, %c0_90] : memref<2x11xf32, #tpu.memory_space<vmem>>, vector<2x11xf32>
    tpu.vector_store %arg7[%c0_89, %c0_90], %114 {strides = array<i32>} : memref<2x11xf32, #tpu.memory_space<vmem>>, vector<2x11xf32>,
    return
  }
}

</mosaic_0001>

<llo_original>
// kernel: tile.8
$region0: #{tile.8}
  #allocation0 [shape = 's32[1]{0}', space=sflag, size = 0x4, scoped, tag = 'scoped memory for tile.8']
  %s0 = inlined_call_operand.vmem [shape: f32[16], index: 0, kind: input, shape index: {}]
  %s1 = inlined_call_operand.vmem [shape: f32[10,16], index: 1, kind: output, shape index: {}]
  // Predicated region
  $region2: #{tile.8} parent=0 // pred_check
    _
  $region3: #{tile.8} parent=0 // pred_check_branch
    %3 = sbr.rel (0) target = $region5
  $region4: #{tile.8} parent=0 // pred_region
    _
  $region5: #{tile.8} parent=0 // pred_fallthru
    _
  %v4 = vld [vmem:[%s0] ss:$0 sm:$0xff]
  %5 = vst [vmem:[%s1] sm:$0xff] %v4
  %s6 = scalar_lea.vmem %s1, 8
  %7 = vst [vmem:[%s6] sm:$0xff] %v4

// kernel: tile.9
$region0: #{tile.9}
  %s0 = inlined_call_operand.vmem [shape: f32[10,16], index: 0, kind: input, shape index: {}]
  %s1 = inlined_call_operand.vmem [shape: f32[1,160], index: 1, kind: output, shape index: {}]
  $region1: #{tile.9} parent=0
    #allocation0 [shape = 'u8[8192]{0}', space=vmem, size = 0x2000, scoped, tag = 'scoped mem for output reshape']
    %s2 = smov 3
    %v3 = vld [vmem:[%s0] ss:$8 sm:%s2]
    %vm4 = vcmask 130048
    %5 = vst.msk [vmem:[#allocation0] ss:$8 sm:$0x3] %vm4, %v3
    %s6 = scalar_lea.vmem %s0, 7
    %v7 = vld [vmem:[%s6] sm:$0x1]
    %8 = vrot.lane.b32.xlu0 %v7, 112
    %v9 = vpop.permute.xlu0 %8
    %vm10 = vcmask 1048448
    %11 = vst.msk [vmem:[#allocation0] sm:$0x1] %vm10, %v9
    %s12 = scalar_lea.vmem %s0, 6
    %v13 = vld [vmem:[%s12] sm:$0x1]
    %14 = vrot.lane.b32.xlu0 %v13, 96
    %v15 = vpop.permute.xlu0 %14
    %vm16 = vcmask 917248
    %17 = vst.msk [vmem:[#allocation0] sm:$0x1] %vm16, %v15
    %s18 = scalar_lea.vmem %s0, 5
    %v19 = vld [vmem:[%s18] sm:$0x1]
    %20 = vrot.lane.b32.xlu0 %v19, 80
    %v21 = vpop.permute.xlu0 %20
    %vm22 = vcmask 786048
    %23 = vst.msk [vmem:[#allocation0] sm:$0x1] %vm22, %v21
    %s24 = scalar_lea.vmem %s0, 4
    %v25 = vld [vmem:[%s24] sm:$0x1]
    %26 = vrot.lane.b32.xlu0 %v25, 64
    %v27 = vpop.permute.xlu0 %26
    %vm28 = vcmask 654848
    %29 = vst.msk [vmem:[#allocation0] sm:$0x1] %vm28, %v27
    %s30 = scalar_lea.vmem %s0, 3
    %v31 = vld [vmem:[%s30] sm:$0x1]
    %32 = vrot.lane.b32.xlu0 %v31, 48
    %v33 = vpop.permute.xlu0 %32
    %vm34 = vcmask 523648
    %35 = vst.msk [vmem:[#allocation0] sm:$0x1] %vm34, %v33
    %s36 = scalar_lea.vmem %s0, 2
    %v37 = vld [vmem:[%s36] sm:$0x1]
    %38 = vrot.lane.b32.xlu0 %v37, 32
    %v39 = vpop.permute.xlu0 %38
    %vm40 = vcmask 392448
    %41 = vst.msk [vmem:[#allocation0] sm:$0x1] %vm40, %v39
    %s42 = scalar_lea.vmem %s0, 1
    %s43 = smov 3
    %v44 = vld [vmem:[%s42] ss:$8 sm:%s43]
    %45 = vrot.lane.b32.xlu0 %v44, 16
    %v46 = vpop.permute.xlu0 %45
    %vm47 = vcmask 261248
    %48 = vst.msk [vmem:[#allocation0] ss:$8 sm:$0x3] %vm47, %v46
    %s50 = sshllo.u32 0, 1
    %v52 = vld [vmem:[#allocation0] sm:%s50]
    %s53 = sshllo.u32 0, 1
    %54 = vst [vmem:[%s1] sm:%s53] %v52
    %s55 = scalar_lea.vmem [#allocation0], 8
    %v56 = vld [vmem:[%s55] sm:%s50]
    %s57 = sshllo.u32 0, 1
    %s58 = scalar_lea.vmem %s1, 1
    %59 = vst [vmem:[%s58] sm:%s57] %v56

// kernel: cnn_forward.1
$region0: #{cnn_forward.1}
  #allocation0 [shape = 'u32[]', space=smem, size = 0x4, offset = 0x4, fixed_abs, tag = 'smem constant byte address 0x4 - core index']
  #allocation1 [shape = 'u32[144,128]{1,0:T(1,128)}', space=vmem, size = 0x12000, scoped, tag = 'internal scratch']
  %s0 = inlined_call_operand.vmem [shape: f32[25,2,250], index: 0, kind: input, shape index: {}]
  %s1 = inlined_call_operand.vmem [shape: f32[250,160], index: 1, kind: input, shape index: {}]
  %s2 = inlined_call_operand.vmem [shape: f32[1,160], index: 2, kind: input, shape index: {}]
  %s3 = inlined_call_operand.vmem [shape: f32[160,512], index: 3, kind: input, shape index: {}]
  %s4 = inlined_call_operand.vmem [shape: f32[1,512], index: 4, kind: input, shape index: {}]
  %s5 = inlined_call_operand.vmem [shape: f32[512,11], index: 5, kind: input, shape index: {}]
  %s6 = inlined_call_operand.vmem [shape: f32[1,11], index: 6, kind: input, shape index: {}]
  %s7 = inlined_call_operand.hbm [shape: f32[2,11], index: 7, kind: output, shape index: {}]
  %s8 = sld [smem:[#allocation0]]
  $region38: #{cnn_forward.1} parent=0
    _
  %s10 = ssub.s32 1, %s8
  %s11 = scalar_select 0, %s10, %s8
  $region1: #{cnn_forward.1} parent=0
    #allocation2 [shape = 'u8[1024]{0}', space=vmem, size = 0x400, scoped, tag = 'output window, operand 0, single buffered']
    #allocation3 [shape = 's32[1]{0}', space=sflag, size = 0x4, scoped, tag = 'scoped memory for cnn_forward.1']
    %12 = vsyncpa [#allocation3], 0
    // Predicated region
    $region2: #{cnn_forward.1} parent=1 // pred_check
      _
    $region3: #{cnn_forward.1} parent=1 // pred_check_branch
      %14 = sbr.rel (0) target = $region5
    $region4: #{cnn_forward.1} parent=1 // pred_region
      _
    $region5: #{cnn_forward.1} parent=1 // pred_fallthru
      _
    // Predicated region
    $region6: #{cnn_forward.1} parent=1 // pred_check
      _
    $region7: #{cnn_forward.1} parent=1 // pred_check_branch
      %16 = sbr.rel (0) target = $region9
    $region8: #{cnn_forward.1} parent=1 // pred_region
      _
    $region9: #{cnn_forward.1} parent=1 // pred_fallthru
      _
    // Predicated region
    $region10: #{cnn_forward.1} parent=1 // pred_check
      _
    $region11: #{cnn_forward.1} parent=1 // pred_check_branch
      %18 = sbr.rel (0) target = $region13
    $region12: #{cnn_forward.1} parent=1 // pred_region
      _
    $region13: #{cnn_forward.1} parent=1 // pred_fallthru
      _
    // Predicated region
    $region14: #{cnn_forward.1} parent=1 // pred_check
      _
    $region15: #{cnn_forward.1} parent=1 // pred_check_branch
      %20 = sbr.rel (0) target = $region17
    $region16: #{cnn_forward.1} parent=1 // pred_region
      _
    $region17: #{cnn_forward.1} parent=1 // pred_fallthru
      _
    // Predicated region
    $region18: #{cnn_forward.1} parent=1 // pred_check
      _
    $region19: #{cnn_forward.1} parent=1 // pred_check_branch
      %22 = sbr.rel (0) target = $region21
    $region20: #{cnn_forward.1} parent=1 // pred_region
      _
    $region21: #{cnn_forward.1} parent=1 // pred_fallthru
      _
    // Predicated region
    $region22: #{cnn_forward.1} parent=1 // pred_check
      _
    $region23: #{cnn_forward.1} parent=1 // pred_check_branch
      %24 = sbr.rel (0) target = $region25
    $region24: #{cnn_forward.1} parent=1 // pred_region
      _
    $region25: #{cnn_forward.1} parent=1 // pred_fallthru
      _
    // Predicated region
    $region26: #{cnn_forward.1} parent=1 // pred_check
      _
    $region27: #{cnn_forward.1} parent=1 // pred_check_branch
      %26 = sbr.rel (0) target = $region29
    $region28: #{cnn_forward.1} parent=1 // pred_region
      _
    $region29: #{cnn_forward.1} parent=1 // pred_fallthru
      _
    %v27 = vld [vmem:[%s1] sm:$0xff]
    %v28 = vld [vmem:[%s1 + $0x8] sm:$0xff]
    %v29 = vld [vmem:[%s1 + $0x10] sm:$0xff]
    %v30 = vld [vmem:[%s1 + $0x18] sm:$0xff]
    %v31 = vld [vmem:[%s1 + $0x20] sm:$0xff]
    %v32 = vld [vmem:[%s1 + $0x28] sm:$0xff]
    %v33 = vld [vmem:[%s1 + $0x30] sm:$0xff]
    %v34 = vld [vmem:[%s1 + $0x38] sm:$0xff]
    %v35 = vld [vmem:[%s1 + $0x40] sm:$0xff]
    %v36 = vld [vmem:[%s1 + $0x48] sm:$0xff]
    %v37 = vld [vmem:[%s1 + $0x50] sm:$0xff]
    %v38 = vld [vmem:[%s1 + $0x58] sm:$0xff]
    %v39 = vld [vmem:[%s1 + $0x60] sm:$0xff]
    %v40 = vld [vmem:[%s1 + $0x68] sm:$0xff]
    %v41 = vld [vmem:[%s1 + $0x70] sm:$0xff]
    %v42 = vld [vmem:[%s1 + $0x78] sm:$0xff]
    %v43 = vld [vmem:[%s1 + $0x80] sm:$0xff]
    %v44 = vld [vmem:[%s1 + $0x88] sm:$0xff]
    %v45 = vld [vmem:[%s1 + $0x90] sm:$0xff]
    %v46 = vld [vmem:[%s1 + $0x98] sm:$0xff]
    %v47 = vld [vmem:[%s1 + $0xa0] sm:$0xff]
    %v48 = vld [vmem:[%s1 + $0xa8] sm:$0xff]
    %v49 = vld [vmem:[%s1 + $0xb0] sm:$0xff]
    %v50 = vld [vmem:[%s1 + $0xb8] sm:$0xff]
    %v51 = vld [vmem:[%s1 + $0xc0] sm:$0xff]
    %v52 = vld [vmem:[%s1 + $0xc8] sm:$0xff]
    %v53 = vld [vmem:[%s1 + $0xd0] sm:$0xff]
    %v54 = vld [vmem:[%s1 + $0xd8] sm:$0xff]
    %v55 = vld [vmem:[%s1 + $0xe0] sm:$0xff]
    %v56 = vld [vmem:[%s1 + $0xe8] sm:$0xff]
    %v57 = vld [vmem:[%s1 + $0xf0] sm:$0xff]
    %v58 = vld [vmem:[%s1 + $0xf8] sm:$0xff]
    %v59 = vld [vmem:[%s1 + $0x100] sm:$0xff]
    %v60 = vld [vmem:[%s1 + $0x108] sm:$0xff]
    %v61 = vld [vmem:[%s1 + $0x110] sm:$0xff]
    %v62 = vld [vmem:[%s1 + $0x118] sm:$0xff]
    %v63 = vld [vmem:[%s1 + $0x120] sm:$0xff]
    %v64 = vld [vmem:[%s1 + $0x128] sm:$0xff]
    %v65 = vld [vmem:[%s1 + $0x130] sm:$0xff]
    %v66 = vld [vmem:[%s1 + $0x138] sm:$0xff]
    %v67 = vld [vmem:[%s1 + $0x140] sm:$0xff]
    %v68 = vld [vmem:[%s1 + $0x148] sm:$0xff]
    %v69 = vld [vmem:[%s1 + $0x150] sm:$0xff]
    %v70 = vld [vmem:[%s1 + $0x158] sm:$0xff]
    %v71 = vld [vmem:[%s1 + $0x160] sm:$0xff]
    %v72 = vld [vmem:[%s1 + $0x168] sm:$0xff]
    %v73 = vld [vmem:[%s1 + $0x170] sm:$0xff]
    %v74 = vld [vmem:[%s1 + $0x178] sm:$0xff]
    %v75 = vld [vmem:[%s1 + $0x180] sm:$0xff]
    %v76 = vld [vmem:[%s1 + $0x188] sm:$0xff]
    %v77 = vld [vmem:[%s1 + $0x190] sm:$0xff]
    %v78 = vld [vmem:[%s1 + $0x198] sm:$0xff]
    %v79 = vld [vmem:[%s1 + $0x1a0] sm:$0xff]
    %v80 = vld [vmem:[%s1 + $0x1a8] sm:$0xff]
    %v81 = vld [vmem:[%s1 + $0x1b0] sm:$0xff]
    %v82 = vld [vmem:[%s1 + $0x1b8] sm:$0xff]
    %v83 = vld [vmem:[%s1 + $0x1c0] sm:$0xff]
    %v84 = vld [vmem:[%s1 + $0x1c8] sm:$0xff]
    %v85 = vld [vmem:[%s1 + $0x1d0] sm:$0xff]
    %v86 = vld [vmem:[%s1 + $0x1d8] sm:$0xff]
    %v87 = vld [vmem:[%s1 + $0x1e0] sm:$0xff]
    %v88 = vld [vmem:[%s1 + $0x1e8] sm:$0xff]
    %v89 = vld [vmem:[%s1 + $0x1f0] sm:$0x3]
    %v90 = vld [vmem:[%s1 + $0x1f8] sm:$0x3]
    %v91 = vld [vmem:[%s0] sm:$0xf]
    %v94 = vunpack.c.l.s4 1983009808
    %v95 = vunpack.c.0.s8 %v94
    %v96 = vlaneseq
    %v97 = vshrl.u32 %v96, 7
    %v98 = vsub.s32 %v95, %v97
    %v99 = vrot.slane %v91, %v98
    %v100 = vcombine.high %v99, %v99
    %vm102 = vcmask 998400
    %v103 = vsel %vm102, %v100, 0
    %vm105 = vcmask 1041408
    %v107 = vsel %vm105, %v89, 0
    %v110 = vsel %vm105, %v90, 0
    %112 = vmatprep.subr.mxu0 %v28
    %113 = vmatpush1.msra.mxu0 %v27
    %114 = vmatprep.subr.mxu0 %v30
    %115 = vmatpush1.msra.mxu0 %v29
    %116 = vmatprep.subr.mxu0 %v32
    %117 = vmatpush1.msra.mxu0 %v31
    %118 = vmatprep.subr.mxu0 %v34
    %119 = vmatpush1.msra.mxu0 %v33
    %120 = vmatprep.subr.mxu0 %v36
    %121 = vmatpush1.msra.mxu0 %v35
    %122 = vmatprep.subr.mxu0 %v38
    %123 = vmatpush1.msra.mxu0 %v37
    %124 = vmatprep.subr.mxu0 %v40
    %125 = vmatpush1.msra.mxu0 %v39
    %126 = vmatprep.subr.mxu0 %v42
    %127 = vmatpush1.msra.mxu0 %v41
    %128 = vmatprep.subr.mxu0 %v44
    %129 = vmatpush1.msra.mxu0 %v43
    %130 = vmatprep.subr.mxu0 %v46
    %131 = vmatpush1.msra.mxu0 %v45
    %132 = vmatprep.subr.mxu0 %v48
    %133 = vmatpush1.msra.mxu0 %v47
    %134 = vmatprep.subr.mxu0 %v50
    %135 = vmatpush1.msra.mxu0 %v49
    %136 = vmatprep.subr.mxu0 %v52
    %137 = vmatpush1.msra.mxu0 %v51
    %138 = vmatprep.subr.mxu0 %v54
    %139 = vmatpush1.msra.mxu0 %v53
    %140 = vmatprep.subr.mxu0 %v56
    %141 = vmatpush1.msra.mxu0 %v55
    %142 = vmatprep.subr.mxu0 %v58
    %143 = vmatpush1.msra.mxu0 %v57
    %144 = vmatprep.subr.mxu0 %v60
    %145 = vmatpush1.msra.mxu0 %v59
    %146 = vmatprep.subr.mxu0 %v62
    %147 = vmatpush1.msra.mxu0 %v61
    %148 = vmatprep.subr.mxu0 %v64
    %149 = vmatpush1.msra.mxu0 %v63
    %150 = vmatprep.subr.mxu0 %v66
    %151 = vmatpush1.msra.mxu0 %v65
    %152 = vmatprep.subr.mxu0 %v68
    %153 = vmatpush1.msra.mxu0 %v67
    %154 = vmatprep.subr.mxu0 %v70
    %155 = vmatpush1.msra.mxu0 %v69
    %156 = vmatprep.subr.mxu0 %v72
    %157 = vmatpush1.msra.mxu0 %v71
    %158 = vmatprep.subr.mxu0 %v74
    %159 = vmatpush1.msra.mxu0 %v73
    %160 = vmatprep.subr.mxu0 %v76
    %161 = vmatpush1.msra.mxu0 %v75
    %162 = vmatprep.subr.mxu0 %v78
    %163 = vmatpush1.msra.mxu0 %v77
    %164 = vmatprep.subr.mxu0 %v80
    %165 = vmatpush1.msra.mxu0 %v79
    %166 = vmatprep.subr.mxu0 %v82
    %167 = vmatpush1.msra.mxu0 %v81
    %168 = vmatprep.subr.mxu0 %v84
    %169 = vmatpush1.msra.mxu0 %v83
    %170 = vmatprep.subr.mxu0 %v86
    %171 = vmatpush1.msra.mxu0 %v85
    %172 = vmatprep.subr.mxu0 %v88
    %173 = vmatpush1.msra.mxu0 %v87
    %174 = vmatprep.subr.mxu0 %v110
    %175 = vmatpush1.msra.mxu0 %v107
    %176 = vmatprep.mubr.f32.mxu0 %v103
    %177 = vmatmul.mubr.f32.gmra.mrb[0].mxu0 %v99
    %v178 = vpop.f32.mrb[0].mxu0
    %v179 = vadd.f32 0.0, %v178
    %v180 = vpop.f32.mrb[0].mxu0
    %v181 = vadd.f32 0.0, %v180
    %182 = vdwg.mxu0
    %s183 = scalar_lea.vmem %s0, 4
    %v184 = vld [vmem:[%s183] sm:$0xf]
    %v187 = vunpack.c.l.s4 1983009808
    %v188 = vunpack.c.0.s8 %v187
    %v189 = vlaneseq
    %v190 = vshrl.u32 %v189, 7
    %v191 = vsub.s32 %v188, %v190
    %v192 = vrot.slane %v184, %v191
    %v193 = vcombine.high %v192, %v192
    %v195 = vsel %vm102, %v193, 0
    %197 = vmatprep.subr.mxu0 %v28
    %198 = vmatpush1.msra.mxu0 %v27
    %199 = vmatprep.subr.mxu0 %v30
    %200 = vmatpush1.msra.mxu0 %v29
    %201 = vmatprep.subr.mxu0 %v32
    %202 = vmatpush1.msra.mxu0 %v31
    %203 = vmatprep.subr.mxu0 %v34
    %204 = vmatpush1.msra.mxu0 %v33
    %205 = vmatprep.subr.mxu0 %v36
    %206 = vmatpush1.msra.mxu0 %v35
    %207 = vmatprep.subr.mxu0 %v38
    %208 = vmatpush1.msra.mxu0 %v37
    %209 = vmatprep.subr.mxu0 %v40
    %210 = vmatpush1.msra.mxu0 %v39
    %211 = vmatprep.subr.mxu0 %v42
    %212 = vmatpush1.msra.mxu0 %v41
    %213 = vmatprep.subr.mxu0 %v44
    %214 = vmatpush1.msra.mxu0 %v43
    %215 = vmatprep.subr.mxu0 %v46
    %216 = vmatpush1.msra.mxu0 %v45
    %217 = vmatprep.subr.mxu0 %v48
    %218 = vmatpush1.msra.mxu0 %v47
    %219 = vmatprep.subr.mxu0 %v50
    %220 = vmatpush1.msra.mxu0 %v49
    %221 = vmatprep.subr.mxu0 %v52
    %222 = vmatpush1.msra.mxu0 %v51
    %223 = vmatprep.subr.mxu0 %v54
    %224 = vmatpush1.msra.mxu0 %v53
    %225 = vmatprep.subr.mxu0 %v56
    %226 = vmatpush1.msra.mxu0 %v55
    %227 = vmatprep.subr.mxu0 %v58
    %228 = vmatpush1.msra.mxu0 %v57
    %229 = vmatprep.subr.mxu0 %v60
    %230 = vmatpush1.msra.mxu0 %v59
    %231 = vmatprep.subr.mxu0 %v62
    %232 = vmatpush1.msra.mxu0 %v61
    %233 = vmatprep.subr.mxu0 %v64
    %234 = vmatpush1.msra.mxu0 %v63
    %235 = vmatprep.subr.mxu0 %v66
    %236 = vmatpush1.msra.mxu0 %v65
    %237 = vmatprep.subr.mxu0 %v68
    %238 = vmatpush1.msra.mxu0 %v67
    %239 = vmatprep.subr.mxu0 %v70
    %240 = vmatpush1.msra.mxu0 %v69
    %241 = vmatprep.subr.mxu0 %v72
    %242 = vmatpush1.msra.mxu0 %v71
    %243 = vmatprep.subr.mxu0 %v74
    %244 = vmatpush1.msra.mxu0 %v73
    %245 = vmatprep.subr.mxu0 %v76
    %246 = vmatpush1.msra.mxu0 %v75
    %247 = vmatprep.subr.mxu0 %v78
    %248 = vmatpush1.msra.mxu0 %v77
    %249 = vmatprep.subr.mxu0 %v80
    %250 = vmatpush1.msra.mxu0 %v79
    %251 = vmatprep.subr.mxu0 %v82
    %252 = vmatpush1.msra.mxu0 %v81
    %253 = vmatprep.subr.mxu0 %v84
    %254 = vmatpush1.msra.mxu0 %v83
    %255 = vmatprep.subr.mxu0 %v86
    %256 = vmatpush1.msra.mxu0 %v85
    %257 = vmatprep.subr.mxu0 %v88
    %258 = vmatpush1.msra.mxu0 %v87
    %259 = vmatprep.subr.mxu0 %v110
    %260 = vmatpush1.msra.mxu0 %v107
    %261 = vmatprep.mubr.f32.mxu0 %v195
    %262 = vmatmul.mubr.f32.gmra.mrb[0].mxu0 %v192
    %v263 = vpop.f32.mrb[0].mxu0
    %v264 = vadd.f32 0.0, %v263
    %v265 = vpop.f32.mrb[0].mxu0
    %v266 = vadd.f32 0.0, %v265
    %267 = vdwg.mxu0
    %v268 = vmax.f32 %v179, %v264
    %v269 = vmax.f32 %v181, %v266
    %s270 = scalar_lea.vmem %s0, 8
    %v271 = vld [vmem:[%s270] sm:$0xf]
    %v274 = vunpack.c.l.s4 1983009808
    %v275 = vunpack.c.0.s8 %v274
    %v276 = vlaneseq
    %v277 = vshrl.u32 %v276, 7
    %v278 = vsub.s32 %v275, %v277
    %v279 = vrot.slane %v271, %v278
    %v280 = vcombine.high %v279, %v279
    %v282 = vsel %vm102, %v280, 0
    %284 = vmatprep.subr.mxu0 %v28
    %285 = vmatpush1.msra.mxu0 %v27
    %286 = vmatprep.subr.mxu0 %v30
    %287 = vmatpush1.msra.mxu0 %v29
    %288 = vmatprep.subr.mxu0 %v32
    %289 = vmatpush1.msra.mxu0 %v31
    %290 = vmatprep.subr.mxu0 %v34
    %291 = vmatpush1.msra.mxu0 %v33
    %292 = vmatprep.subr.mxu0 %v36
    %293 = vmatpush1.msra.mxu0 %v35
    %294 = vmatprep.subr.mxu0 %v38
    %295 = vmatpush1.msra.mxu0 %v37
    %296 = vmatprep.subr.mxu0 %v40
    %297 = vmatpush1.msra.mxu0 %v39
    %298 = vmatprep.subr.mxu0 %v42
    %299 = vmatpush1.msra.mxu0 %v41
    %300 = vmatprep.subr.mxu0 %v44
    %301 = vmatpush1.msra.mxu0 %v43
    %302 = vmatprep.subr.mxu0 %v46
    %303 = vmatpush1.msra.mxu0 %v45
    %304 = vmatprep.subr.mxu0 %v48
    %305 = vmatpush1.msra.mxu0 %v47
    %306 = vmatprep.subr.mxu0 %v50
    %307 = vmatpush1.msra.mxu0 %v49
    %308 = vmatprep.subr.mxu0 %v52
    %309 = vmatpush1.msra.mxu0 %v51
    %310 = vmatprep.subr.mxu0 %v54
    %311 = vmatpush1.msra.mxu0 %v53
    %312 = vmatprep.subr.mxu0 %v56
    %313 = vmatpush1.msra.mxu0 %v55
    %314 = vmatprep.subr.mxu0 %v58
    %315 = vmatpush1.msra.mxu0 %v57
    %316 = vmatprep.subr.mxu0 %v60
    %317 = vmatpush1.msra.mxu0 %v59
    %318 = vmatprep.subr.mxu0 %v62
    %319 = vmatpush1.msra.mxu0 %v61
    %320 = vmatprep.subr.mxu0 %v64
    %321 = vmatpush1.msra.mxu0 %v63
    %322 = vmatprep.subr.mxu0 %v66
    %323 = vmatpush1.msra.mxu0 %v65
    %324 = vmatprep.subr.mxu0 %v68
    %325 = vmatpush1.msra.mxu0 %v67
    %326 = vmatprep.subr.mxu0 %v70
    %327 = vmatpush1.msra.mxu0 %v69
    %328 = vmatprep.subr.mxu0 %v72
    %329 = vmatpush1.msra.mxu0 %v71
    %330 = vmatprep.subr.mxu0 %v74
    %331 = vmatpush1.msra.mxu0 %v73
    %332 = vmatprep.subr.mxu0 %v76
    %333 = vmatpush1.msra.mxu0 %v75
    %334 = vmatprep.subr.mxu0 %v78
    %335 = vmatpush1.msra.mxu0 %v77
    %336 = vmatprep.subr.mxu0 %v80
    %337 = vmatpush1.msra.mxu0 %v79
    %338 = vmatprep.subr.mxu0 %v82
    %339 = vmatpush1.msra.mxu0 %v81
    %340 = vmatprep.subr.mxu0 %v84
    %341 = vmatpush1.msra.mxu0 %v83
    %342 = vmatprep.subr.mxu0 %v86
    %343 = vmatpush1.msra.mxu0 %v85
    %344 = vmatprep.subr.mxu0 %v88
    %345 = vmatpush1.msra.mxu0 %v87
    %346 = vmatprep.subr.mxu0 %v110
    %347 = vmatpush1.msra.mxu0 %v107
    %348 = vmatprep.mubr.f32.mxu0 %v282
    %349 = vmatmul.mubr.f32.gmra.mrb[0].mxu0 %v279
    %v350 = vpop.f32.mrb[0].mxu0
    %v351 = vadd.f32 0.0, %v350
    %v352 = vpop.f32.mrb[0].mxu0
    %v353 = vadd.f32 0.0, %v352
    %354 = vdwg.mxu0
    %v355 = vmax.f32 %v268, %v351
    %v356 = vmax.f32 %v269, %v353
    %s357 = scalar_lea.vmem %s0, 12
    %v358 = vld [vmem:[%s357] sm:$0xf]
    %v361 = vunpack.c.l.s4 1983009808
    %v362 = vunpack.c.0.s8 %v361
    %v363 = vlaneseq
    %v364 = vshrl.u32 %v363, 7
    %v365 = vsub.s32 %v362, %v364
    %v366 = vrot.slane %v358, %v365
    %v367 = vcombine.high %v366, %v366
    %v369 = vsel %vm102, %v367, 0
    %371 = vmatprep.subr.mxu0 %v28
    %372 = vmatpush1.msra.mxu0 %v27
    %373 = vmatprep.subr.mxu0 %v30
    %374 = vmatpush1.msra.mxu0 %v29
    %375 = vmatprep.subr.mxu0 %v32
    %376 = vmatpush1.msra.mxu0 %v31
    %377 = vmatprep.subr.mxu0 %v34
    %378 = vmatpush1.msra.mxu0 %v33
    %379 = vmatprep.subr.mxu0 %v36
    %380 = vmatpush1.msra.mxu0 %v35
    %381 = vmatprep.subr.mxu0 %v38
    %382 = vmatpush1.msra.mxu0 %v37
    %383 = vmatprep.subr.mxu0 %v40
    %384 = vmatpush1.msra.mxu0 %v39
    %385 = vmatprep.subr.mxu0 %v42
    %386 = vmatpush1.msra.mxu0 %v41
    %387 = vmatprep.subr.mxu0 %v44
    %388 = vmatpush1.msra.mxu0 %v43
    %389 = vmatprep.subr.mxu0 %v46
    %390 = vmatpush1.msra.mxu0 %v45
    %391 = vmatprep.subr.mxu0 %v48
    %392 = vmatpush1.msra.mxu0 %v47
    %393 = vmatprep.subr.mxu0 %v50
    %394 = vmatpush1.msra.mxu0 %v49
    %395 = vmatprep.subr.mxu0 %v52
    %396 = vmatpush1.msra.mxu0 %v51
    %397 = vmatprep.subr.mxu0 %v54
    %398 = vmatpush1.msra.mxu0 %v53
    %399 = vmatprep.subr.mxu0 %v56
    %400 = vmatpush1.msra.mxu0 %v55
    %401 = vmatprep.subr.mxu0 %v58
    %402 = vmatpush1.msra.mxu0 %v57
    %403 = vmatprep.subr.mxu0 %v60
    %404 = vmatpush1.msra.mxu0 %v59
    %405 = vmatprep.subr.mxu0 %v62
    %406 = vmatpush1.msra.mxu0 %v61
    %407 = vmatprep.subr.mxu0 %v64
    %408 = vmatpush1.msra.mxu0 %v63
    %409 = vmatprep.subr.mxu0 %v66
    %410 = vmatpush1.msra.mxu0 %v65
    %411 = vmatprep.subr.mxu0 %v68
    %412 = vmatpush1.msra.mxu0 %v67
    %413 = vmatprep.subr.mxu0 %v70
    %414 = vmatpush1.msra.mxu0 %v69
    %415 = vmatprep.subr.mxu0 %v72
    %416 = vmatpush1.msra.mxu0 %v71
    %417 = vmatprep.subr.mxu0 %v74
    %418 = vmatpush1.msra.mxu0 %v73
    %419 = vmatprep.subr.mxu0 %v76
    %420 = vmatpush1.msra.mxu0 %v75
    %421 = vmatprep.subr.mxu0 %v78
    %422 = vmatpush1.msra.mxu0 %v77
    %423 = vmatprep.subr.mxu0 %v80
    %424 = vmatpush1.msra.mxu0 %v79
    %425 = vmatprep.subr.mxu0 %v82
    %426 = vmatpush1.msra.mxu0 %v81
    %427 = vmatprep.subr.mxu0 %v84
    %428 = vmatpush1.msra.mxu0 %v83
    %429 = vmatprep.subr.mxu0 %v86
    %430 = vmatpush1.msra.mxu0 %v85
    %431 = vmatprep.subr.mxu0 %v88
    %432 = vmatpush1.msra.mxu0 %v87
    %433 = vmatprep.subr.mxu0 %v110
    %434 = vmatpush1.msra.mxu0 %v107
    %435 = vmatprep.mubr.f32.mxu0 %v369
    %436 = vmatmul.mubr.f32.gmra.mrb[0].mxu0 %v366
    %v437 = vpop.f32.mrb[0].mxu0
    %v438 = vadd.f32 0.0, %v437
    %v439 = vpop.f32.mrb[0].mxu0
    %v440 = vadd.f32 0.0, %v439
    %441 = vdwg.mxu0
    %v442 = vmax.f32 %v355, %v438
    %v443 = vmax.f32 %v356, %v440
    %s444 = scalar_lea.vmem %s0, 16
    %v445 = vld [vmem:[%s444] sm:$0xf]
    %v448 = vunpack.c.l.s4 1983009808
    %v449 = vunpack.c.0.s8 %v448
    %v450 = vlaneseq
    %v451 = vshrl.u32 %v450, 7
    %v452 = vsub.s32 %v449, %v451
    %v453 = vrot.slane %v445, %v452
    %v454 = vcombine.high %v453, %v453
    %v456 = vsel %vm102, %v454, 0
    %458 = vmatprep.subr.mxu0 %v28
    %459 = vmatpush1.msra.mxu0 %v27
    %460 = vmatprep.subr.mxu0 %v30
    %461 = vmatpush1.msra.mxu0 %v29
    %462 = vmatprep.subr.mxu0 %v32
    %463 = vmatpush1.msra.mxu0 %v31
    %464 = vmatprep.subr.mxu0 %v34
    %465 = vmatpush1.msra.mxu0 %v33
    %466 = vmatprep.subr.mxu0 %v36
    %467 = vmatpush1.msra.mxu0 %v35
    %468 = vmatprep.subr.mxu0 %v38
    %469 = vmatpush1.msra.mxu0 %v37
    %470 = vmatprep.subr.mxu0 %v40
    %471 = vmatpush1.msra.mxu0 %v39
    %472 = vmatprep.subr.mxu0 %v42
    %473 = vmatpush1.msra.mxu0 %v41
    %474 = vmatprep.subr.mxu0 %v44
    %475 = vmatpush1.msra.mxu0 %v43
    %476 = vmatprep.subr.mxu0 %v46
    %477 = vmatpush1.msra.mxu0 %v45
    %478 = vmatprep.subr.mxu0 %v48
    %479 = vmatpush1.msra.mxu0 %v47
    %480 = vmatprep.subr.mxu0 %v50
    %481 = vmatpush1.msra.mxu0 %v49
    %482 = vmatprep.subr.mxu0 %v52
    %483 = vmatpush1.msra.mxu0 %v51
    %484 = vmatprep.subr.mxu0 %v54
    %485 = vmatpush1.msra.mxu0 %v53
    %486 = vmatprep.subr.mxu0 %v56
    %487 = vmatpush1.msra.mxu0 %v55
    %488 = vmatprep.subr.mxu0 %v58
    %489 = vmatpush1.msra.mxu0 %v57
    %490 = vmatprep.subr.mxu0 %v60
    %491 = vmatpush1.msra.mxu0 %v59
    %492 = vmatprep.subr.mxu0 %v62
    %493 = vmatpush1.msra.mxu0 %v61
    %494 = vmatprep.subr.mxu0 %v64
    %495 = vmatpush1.msra.mxu0 %v63
    %496 = vmatprep.subr.mxu0 %v66
    %497 = vmatpush1.msra.mxu0 %v65
    %498 = vmatprep.subr.mxu0 %v68
    %499 = vmatpush1.msra.mxu0 %v67
    %500 = vmatprep.subr.mxu0 %v70
    %501 = vmatpush1.msra.mxu0 %v69
    %502 = vmatprep.subr.mxu0 %v72
    %503 = vmatpush1.msra.mxu0 %v71
    %504 = vmatprep.subr.mxu0 %v74
    %505 = vmatpush1.msra.mxu0 %v73
    %506 = vmatprep.subr.mxu0 %v76
    %507 = vmatpush1.msra.mxu0 %v75
    %508 = vmatprep.subr.mxu0 %v78
    %509 = vmatpush1.msra.mxu0 %v77
    %510 = vmatprep.subr.mxu0 %v80
    %511 = vmatpush1.msra.mxu0 %v79
    %512 = vmatprep.subr.mxu0 %v82
    %513 = vmatpush1.msra.mxu0 %v81
    %514 = vmatprep.subr.mxu0 %v84
    %515 = vmatpush1.msra.mxu0 %v83
    %516 = vmatprep.subr.mxu0 %v86
    %517 = vmatpush1.msra.mxu0 %v85
    %518 = vmatprep.subr.mxu0 %v88
    %519 = vmatpush1.msra.mxu0 %v87
    %520 = vmatprep.subr.mxu0 %v110
    %521 = vmatpush1.msra.mxu0 %v107
    %522 = vmatprep.mubr.f32.mxu0 %v456
    %523 = vmatmul.mubr.f32.gmra.mrb[0].mxu0 %v453
    %v524 = vpop.f32.mrb[0].mxu0
    %v525 = vadd.f32 0.0, %v524
    %v526 = vpop.f32.mrb[0].mxu0
    %v527 = vadd.f32 0.0, %v526
    %528 = vdwg.mxu0
    %v529 = vmax.f32 %v442, %v525
    %v530 = vmax.f32 %v443, %v527
    %s531 = scalar_lea.vmem %s0, 20
    %v532 = vld [vmem:[%s531] sm:$0xf]
    %v535 = vunpack.c.l.s4 1983009808
    %v536 = vunpack.c.0.s8 %v535
    %v537 = vlaneseq
    %v538 = vshrl.u32 %v537, 7
    %v539 = vsub.s32 %v536, %v538
    %v540 = vrot.slane %v532, %v539
    %v541 = vcombine.high %v540, %v540
    %v543 = vsel %vm102, %v541, 0
    %545 = vmatprep.subr.mxu0 %v28
    %546 = vmatpush1.msra.mxu0 %v27
    %547 = vmatprep.subr.mxu0 %v30
    %548 = vmatpush1.msra.mxu0 %v29
    %549 = vmatprep.subr.mxu0 %v32
    %550 = vmatpush1.msra.mxu0 %v31
    %551 = vmatprep.subr.mxu0 %v34
    %552 = vmatpush1.msra.mxu0 %v33
    %553 = vmatprep.subr.mxu0 %v36
    %554 = vmatpush1.msra.mxu0 %v35
    %555 = vmatprep.subr.mxu0 %v38
    %556 = vmatpush1.msra.mxu0 %v37
    %557 = vmatprep.subr.mxu0 %v40
    %558 = vmatpush1.msra.mxu0 %v39
    %559 = vmatprep.subr.mxu0 %v42
    %560 = vmatpush1.msra.mxu0 %v41
    %561 = vmatprep.subr.mxu0 %v44
    %562 = vmatpush1.msra.mxu0 %v43
    %563 = vmatprep.subr.mxu0 %v46
    %564 = vmatpush1.msra.mxu0 %v45
    %565 = vmatprep.subr.mxu0 %v48
    %566 = vmatpush1.msra.mxu0 %v47
    %567 = vmatprep.subr.mxu0 %v50
    %568 = vmatpush1.msra.mxu0 %v49
    %569 = vmatprep.subr.mxu0 %v52
    %570 = vmatpush1.msra.mxu0 %v51
    %571 = vmatprep.subr.mxu0 %v54
    %572 = vmatpush1.msra.mxu0 %v53
    %573 = vmatprep.subr.mxu0 %v56
    %574 = vmatpush1.msra.mxu0 %v55
    %575 = vmatprep.subr.mxu0 %v58
    %576 = vmatpush1.msra.mxu0 %v57
    %577 = vmatprep.subr.mxu0 %v60
    %578 = vmatpush1.msra.mxu0 %v59
    %579 = vmatprep.subr.mxu0 %v62
    %580 = vmatpush1.msra.mxu0 %v61
    %581 = vmatprep.subr.mxu0 %v64
    %582 = vmatpush1.msra.mxu0 %v63
    %583 = vmatprep.subr.mxu0 %v66
    %584 = vmatpush1.msra.mxu0 %v65
    %585 = vmatprep.subr.mxu0 %v68
    %586 = vmatpush1.msra.mxu0 %v67
    %587 = vmatprep.subr.mxu0 %v70
    %588 = vmatpush1.msra.mxu0 %v69
    %589 = vmatprep.subr.mxu0 %v72
    %590 = vmatpush1.msra.mxu0 %v71
    %591 = vmatprep.subr.mxu0 %v74
    %592 = vmatpush1.msra.mxu0 %v73
    %593 = vmatprep.subr.mxu0 %v76
    %594 = vmatpush1.msra.mxu0 %v75
    %595 = vmatprep.subr.mxu0 %v78
    %596 = vmatpush1.msra.mxu0 %v77
    %597 = vmatprep.subr.mxu0 %v80
    %598 = vmatpush1.msra.mxu0 %v79
    %599 = vmatprep.subr.mxu0 %v82
    %600 = vmatpush1.msra.mxu0 %v81
    %601 = vmatprep.subr.mxu0 %v84
    %602 = vmatpush1.msra.mxu0 %v83
    %603 = vmatprep.subr.mxu0 %v86
    %604 = vmatpush1.msra.mxu0 %v85
    %605 = vmatprep.subr.mxu0 %v88
    %606 = vmatpush1.msra.mxu0 %v87
    %607 = vmatprep.subr.mxu0 %v110
    %608 = vmatpush1.msra.mxu0 %v107
    %609 = vmatprep.mubr.f32.mxu0 %v543
    %610 = vmatmul.mubr.f32.gmra.mrb[0].mxu0 %v540
    %v611 = vpop.f32.mrb[0].mxu0
    %v612 = vadd.f32 0.0, %v611
    %v613 = vpop.f32.mrb[0].mxu0
    %v614 = vadd.f32 0.0, %v613
    %615 = vdwg.mxu0
    %v616 = vmax.f32 %v529, %v612
    %v617 = vmax.f32 %v530, %v614
    %s618 = scalar_lea.vmem %s0, 24
    %v619 = vld [vmem:[%s618] sm:$0xf]
    %v622 = vunpack.c.l.s4 1983009808
    %v623 = vunpack.c.0.s8 %v622
    %v624 = vlaneseq
    %v625 = vshrl.u32 %v624, 7
    %v626 = vsub.s32 %v623, %v625
    %v627 = vrot.slane %v619, %v626
    %v628 = vcombine.high %v627, %v627
    %v630 = vsel %vm102, %v628, 0
    %632 = vmatprep.subr.mxu0 %v28
    %633 = vmatpush1.msra.mxu0 %v27
    %634 = vmatprep.subr.mxu0 %v30
    %635 = vmatpush1.msra.mxu0 %v29
    %636 = vmatprep.subr.mxu0 %v32
    %637 = vmatpush1.msra.mxu0 %v31
    %638 = vmatprep.subr.mxu0 %v34
    %639 = vmatpush1.msra.mxu0 %v33
    %640 = vmatprep.subr.mxu0 %v36
    %641 = vmatpush1.msra.mxu0 %v35
    %642 = vmatprep.subr.mxu0 %v38
    %643 = vmatpush1.msra.mxu0 %v37
    %644 = vmatprep.subr.mxu0 %v40
    %645 = vmatpush1.msra.mxu0 %v39
    %646 = vmatprep.subr.mxu0 %v42
    %647 = vmatpush1.msra.mxu0 %v41
    %648 = vmatprep.subr.mxu0 %v44
    %649 = vmatpush1.msra.mxu0 %v43
    %650 = vmatprep.subr.mxu0 %v46
    %651 = vmatpush1.msra.mxu0 %v45
    %652 = vmatprep.subr.mxu0 %v48
    %653 = vmatpush1.msra.mxu0 %v47
    %654 = vmatprep.subr.mxu0 %v50
    %655 = vmatpush1.msra.mxu0 %v49
    %656 = vmatprep.subr.mxu0 %v52
    %657 = vmatpush1.msra.mxu0 %v51
    %658 = vmatprep.subr.mxu0 %v54
    %659 = vmatpush1.msra.mxu0 %v53
    %660 = vmatprep.subr.mxu0 %v56
    %661 = vmatpush1.msra.mxu0 %v55
    %662 = vmatprep.subr.mxu0 %v58
    %663 = vmatpush1.msra.mxu0 %v57
    %664 = vmatprep.subr.mxu0 %v60
    %665 = vmatpush1.msra.mxu0 %v59
    %666 = vmatprep.subr.mxu0 %v62
    %667 = vmatpush1.msra.mxu0 %v61
    %668 = vmatprep.subr.mxu0 %v64
    %669 = vmatpush1.msra.mxu0 %v63
    %670 = vmatprep.subr.mxu0 %v66
    %671 = vmatpush1.msra.mxu0 %v65
    %672 = vmatprep.subr.mxu0 %v68
    %673 = vmatpush1.msra.mxu0 %v67
    %674 = vmatprep.subr.mxu0 %v70
    %675 = vmatpush1.msra.mxu0 %v69
    %676 = vmatprep.subr.mxu0 %v72
    %677 = vmatpush1.msra.mxu0 %v71
    %678 = vmatprep.subr.mxu0 %v74
    %679 = vmatpush1.msra.mxu0 %v73
    %680 = vmatprep.subr.mxu0 %v76
    %681 = vmatpush1.msra.mxu0 %v75
    %682 = vmatprep.subr.mxu0 %v78
    %683 = vmatpush1.msra.mxu0 %v77
    %684 = vmatprep.subr.mxu0 %v80
    %685 = vmatpush1.msra.mxu0 %v79
    %686 = vmatprep.subr.mxu0 %v82
    %687 = vmatpush1.msra.mxu0 %v81
    %688 = vmatprep.subr.mxu0 %v84
    %689 = vmatpush1.msra.mxu0 %v83
    %690 = vmatprep.subr.mxu0 %v86
    %691 = vmatpush1.msra.mxu0 %v85
    %692 = vmatprep.subr.mxu0 %v88
    %693 = vmatpush1.msra.mxu0 %v87
    %694 = vmatprep.subr.mxu0 %v110
    %695 = vmatpush1.msra.mxu0 %v107
    %696 = vmatprep.mubr.f32.mxu0 %v630
    %697 = vmatmul.mubr.f32.gmra.mrb[0].mxu0 %v627
    %v698 = vpop.f32.mrb[0].mxu0
    %v699 = vadd.f32 0.0, %v698
    %v700 = vpop.f32.mrb[0].mxu0
    %v701 = vadd.f32 0.0, %v700
    %702 = vdwg.mxu0
    %v703 = vmax.f32 %v616, %v699
    %v704 = vmax.f32 %v617, %v701
    %s705 = scalar_lea.vmem %s0, 28
    %v706 = vld [vmem:[%s705] sm:$0xf]
    %v709 = vunpack.c.l.s4 1983009808
    %v710 = vunpack.c.0.s8 %v709
    %v711 = vlaneseq
    %v712 = vshrl.u32 %v711, 7
    %v713 = vsub.s32 %v710, %v712
    %v714 = vrot.slane %v706, %v713
    %v715 = vcombine.high %v714, %v714
    %v717 = vsel %vm102, %v715, 0
    %719 = vmatprep.subr.mxu0 %v28
    %720 = vmatpush1.msra.mxu0 %v27
    %721 = vmatprep.subr.mxu0 %v30
    %722 = vmatpush1.msra.mxu0 %v29
    %723 = vmatprep.subr.mxu0 %v32
    %724 = vmatpush1.msra.mxu0 %v31
    %725 = vmatprep.subr.mxu0 %v34
    %726 = vmatpush1.msra.mxu0 %v33
    %727 = vmatprep.subr.mxu0 %v36
    %728 = vmatpush1.msra.mxu0 %v35
    %729 = vmatprep.subr.mxu0 %v38
    %730 = vmatpush1.msra.mxu0 %v37
    %731 = vmatprep.subr.mxu0 %v40
    %732 = vmatpush1.msra.mxu0 %v39
    %733 = vmatprep.subr.mxu0 %v42
    %734 = vmatpush1.msra.mxu0 %v41
    %735 = vmatprep.subr.mxu0 %v44
    %736 = vmatpush1.msra.mxu0 %v43
    %737 = vmatprep.subr.mxu0 %v46
    %738 = vmatpush1.msra.mxu0 %v45
    %739 = vmatprep.subr.mxu0 %v48
    %740 = vmatpush1.msra.mxu0 %v47
    %741 = vmatprep.subr.mxu0 %v50
    %742 = vmatpush1.msra.mxu0 %v49
    %743 = vmatprep.subr.mxu0 %v52
    %744 = vmatpush1.msra.mxu0 %v51
    %745 = vmatprep.subr.mxu0 %v54
    %746 = vmatpush1.msra.mxu0 %v53
    %747 = vmatprep.subr.mxu0 %v56
    %748 = vmatpush1.msra.mxu0 %v55
    %749 = vmatprep.subr.mxu0 %v58
    %750 = vmatpush1.msra.mxu0 %v57
    %751 = vmatprep.subr.mxu0 %v60
    %752 = vmatpush1.msra.mxu0 %v59
    %753 = vmatprep.subr.mxu0 %v62
    %754 = vmatpush1.msra.mxu0 %v61
    %755 = vmatprep.subr.mxu0 %v64
    %756 = vmatpush1.msra.mxu0 %v63
    %757 = vmatprep.subr.mxu0 %v66
    %758 = vmatpush1.msra.mxu0 %v65
    %759 = vmatprep.subr.mxu0 %v68
    %760 = vmatpush1.msra.mxu0 %v67
    %761 = vmatprep.subr.mxu0 %v70
    %762 = vmatpush1.msra.mxu0 %v69
    %763 = vmatprep.subr.mxu0 %v72
    %764 = vmatpush1.msra.mxu0 %v71
    %765 = vmatprep.subr.mxu0 %v74
    %766 = vmatpush1.msra.mxu0 %v73
    %767 = vmatprep.subr.mxu0 %v76
    %768 = vmatpush1.msra.mxu0 %v75
    %769 = vmatprep.subr.mxu0 %v78
    %770 = vmatpush1.msra.mxu0 %v77
    %771 = vmatprep.subr.mxu0 %v80
    %772 = vmatpush1.msra.mxu0 %v79
    %773 = vmatprep.subr.mxu0 %v82
    %774 = vmatpush1.msra.mxu0 %v81
    %775 = vmatprep.subr.mxu0 %v84
    %776 = vmatpush1.msra.mxu0 %v83
    %777 = vmatprep.subr.mxu0 %v86
    %778 = vmatpush1.msra.mxu0 %v85
    %779 = vmatprep.subr.mxu0 %v88
    %780 = vmatpush1.msra.mxu0 %v87
    %781 = vmatprep.subr.mxu0 %v110
    %782 = vmatpush1.msra.mxu0 %v107
    %783 = vmatprep.mubr.f32.mxu0 %v717
    %784 = vmatmul.mubr.f32.gmra.mrb[0].mxu0 %v714
    %v785 = vpop.f32.mrb[0].mxu0
    %v786 = vadd.f32 0.0, %v785
    %v787 = vpop.f32.mrb[0].mxu0
    %v788 = vadd.f32 0.0, %v787
    %789 = vdwg.mxu0
    %v790 = vmax.f32 %v703, %v786
    %v791 = vmax.f32 %v704, %v788
    %s792 = scalar_lea.vmem %s0, 32
    %v793 = vld [vmem:[%s792] sm:$0xf]
    %v796 = vunpack.c.l.s4 1983009808
    %v797 = vunpack.c.0.s8 %v796
    %v798 = vlaneseq
    %v799 = vshrl.u32 %v798, 7
    %v800 = vsub.s32 %v797, %v799
    %v801 = vrot.slane %v793, %v800
    %v802 = vcombine.high %v801, %v801
    %v804 = vsel %vm102, %v802, 0
    %806 = vmatprep.subr.mxu0 %v28
    %807 = vmatpush1.msra.mxu0 %v27
    %808 = vmatprep.subr.mxu0 %v30
    %809 = vmatpush1.msra.mxu0 %v29
    %810 = vmatprep.subr.mxu0 %v32
    %811 = vmatpush1.msra.mxu0 %v31
    %812 = vmatprep.subr.mxu0 %v34
    %813 = vmatpush1.msra.mxu0 %v33
    %814 = vmatprep.subr.mxu0 %v36
    %815 = vmatpush1.msra.mxu0 %v35
    %816 = vmatprep.subr.mxu0 %v38
    %817 = vmatpush1.msra.mxu0 %v37
    %818 = vmatprep.subr.mxu0 %v40
    %819 = vmatpush1.msra.mxu0 %v39
    %820 = vmatprep.subr.mxu0 %v42
    %821 = vmatpush1.msra.mxu0 %v41
    %822 = vmatprep.subr.mxu0 %v44
    %823 = vmatpush1.msra.mxu0 %v43
    %824 = vmatprep.subr.mxu0 %v46
    %825 = vmatpush1.msra.mxu0 %v45
    %826 = vmatprep.subr.mxu0 %v48
    %827 = vmatpush1.msra.mxu0 %v47
    %828 = vmatprep.subr.mxu0 %v50
    %829 = vmatpush1.msra.mxu0 %v49
    %830 = vmatprep.subr.mxu0 %v52
    %831 = vmatpush1.msra.mxu0 %v51
    %832 = vmatprep.subr.mxu0 %v54
    %833 = vmatpush1.msra.mxu0 %v53
    %834 = vmatprep.subr.mxu0 %v56
    %835 = vmatpush1.msra.mxu0 %v55
    %836 = vmatprep.subr.mxu0 %v58
    %837 = vmatpush1.msra.mxu0 %v57
    %838 = vmatprep.subr.mxu0 %v60
    %839 = vmatpush1.msra.mxu0 %v59
    %840 = vmatprep.subr.mxu0 %v62
    %841 = vmatpush1.msra.mxu0 %v61
    %842 = vmatprep.subr.mxu0 %v64
    %843 = vmatpush1.msra.mxu0 %v63
    %844 = vmatprep.subr.mxu0 %v66
    %845 = vmatpush1.msra.mxu0 %v65
    %846 = vmatprep.subr.mxu0 %v68
    %847 = vmatpush1.msra.mxu0 %v67
    %848 = vmatprep.subr.mxu0 %v70
    %849 = vmatpush1.msra.mxu0 %v69
    %850 = vmatprep.subr.mxu0 %v72
    %851 = vmatpush1.msra.mxu0 %v71
    %852 = vmatprep.subr.mxu0 %v74
    %853 = vmatpush1.msra.mxu0 %v73
    %854 = vmatprep.subr.mxu0 %v76
    %855 = vmatpush1.msra.mxu0 %v75
    %856 = vmatprep.subr.mxu0 %v78
    %857 = vmatpush1.msra.mxu0 %v77
    %858 = vmatprep.subr.mxu0 %v80
    %859 = vmatpush1.msra.mxu0 %v79
    %860 = vmatprep.subr.mxu0 %v82
    %861 = vmatpush1.msra.mxu0 %v81
    %862 = vmatprep.subr.mxu0 %v84
    %863 = vmatpush1.msra.mxu0 %v83
    %864 = vmatprep.subr.mxu0 %v86
    %865 = vmatpush1.msra.mxu0 %v85
    %866 = vmatprep.subr.mxu0 %v88
    %867 = vmatpush1.msra.mxu0 %v87
    %868 = vmatprep.subr.mxu0 %v110
    %869 = vmatpush1.msra.mxu0 %v107
    %870 = vmatprep.mubr.f32.mxu0 %v804
    %871 = vmatmul.mubr.f32.gmra.mrb[0].mxu0 %v801
    %v872 = vpop.f32.mrb[0].mxu0
    %v873 = vadd.f32 0.0, %v872
    %v874 = vpop.f32.mrb[0].mxu0
    %v875 = vadd.f32 0.0, %v874
    %876 = vdwg.mxu0
    %v877 = vmax.f32 %v790, %v873
    %v878 = vmax.f32 %v791, %v875
    %s879 = scalar_lea.vmem %s0, 36
    %v880 = vld [vmem:[%s879] sm:$0xf]
    %v883 = vunpack.c.l.s4 1983009808
    %v884 = vunpack.c.0.s8 %v883
    %v885 = vlaneseq
    %v886 = vshrl.u32 %v885, 7
    %v887 = vsub.s32 %v884, %v886
    %v888 = vrot.slane %v880, %v887
    %v889 = vcombine.high %v888, %v888
    %v891 = vsel %vm102, %v889, 0
    %893 = vmatprep.subr.mxu0 %v28
    %894 = vmatpush1.msra.mxu0 %v27
    %895 = vmatprep.subr.mxu0 %v30
    %896 = vmatpush1.msra.mxu0 %v29
    %897 = vmatprep.subr.mxu0 %v32
    %898 = vmatpush1.msra.mxu0 %v31
    %899 = vmatprep.subr.mxu0 %v34
    %900 = vmatpush1.msra.mxu0 %v33
    %901 = vmatprep.subr.mxu0 %v36
    %902 = vmatpush1.msra.mxu0 %v35
    %903 = vmatprep.subr.mxu0 %v38
    %904 = vmatpush1.msra.mxu0 %v37
    %905 = vmatprep.subr.mxu0 %v40
    %906 = vmatpush1.msra.mxu0 %v39
    %907 = vmatprep.subr.mxu0 %v42
    %908 = vmatpush1.msra.mxu0 %v41
    %909 = vmatprep.subr.mxu0 %v44
    %910 = vmatpush1.msra.mxu0 %v43
    %911 = vmatprep.subr.mxu0 %v46
    %912 = vmatpush1.msra.mxu0 %v45
    %913 = vmatprep.subr.mxu0 %v48
    %914 = vmatpush1.msra.mxu0 %v47
    %915 = vmatprep.subr.mxu0 %v50
    %916 = vmatpush1.msra.mxu0 %v49
    %917 = vmatprep.subr.mxu0 %v52
    %918 = vmatpush1.msra.mxu0 %v51
    %919 = vmatprep.subr.mxu0 %v54
    %920 = vmatpush1.msra.mxu0 %v53
    %921 = vmatprep.subr.mxu0 %v56
    %922 = vmatpush1.msra.mxu0 %v55
    %923 = vmatprep.subr.mxu0 %v58
    %924 = vmatpush1.msra.mxu0 %v57
    %925 = vmatprep.subr.mxu0 %v60
    %926 = vmatpush1.msra.mxu0 %v59
    %927 = vmatprep.subr.mxu0 %v62
    %928 = vmatpush1.msra.mxu0 %v61
    %929 = vmatprep.subr.mxu0 %v64
    %930 = vmatpush1.msra.mxu0 %v63
    %931 = vmatprep.subr.mxu0 %v66
    %932 = vmatpush1.msra.mxu0 %v65
    %933 = vmatprep.subr.mxu0 %v68
    %934 = vmatpush1.msra.mxu0 %v67
    %935 = vmatprep.subr.mxu0 %v70
    %936 = vmatpush1.msra.mxu0 %v69
    %937 = vmatprep.subr.mxu0 %v72
    %938 = vmatpush1.msra.mxu0 %v71
    %939 = vmatprep.subr.mxu0 %v74
    %940 = vmatpush1.msra.mxu0 %v73
    %941 = vmatprep.subr.mxu0 %v76
    %942 = vmatpush1.msra.mxu0 %v75
    %943 = vmatprep.subr.mxu0 %v78
    %944 = vmatpush1.msra.mxu0 %v77
    %945 = vmatprep.subr.mxu0 %v80
    %946 = vmatpush1.msra.mxu0 %v79
    %947 = vmatprep.subr.mxu0 %v82
    %948 = vmatpush1.msra.mxu0 %v81
    %949 = vmatprep.subr.mxu0 %v84
    %950 = vmatpush1.msra.mxu0 %v83
    %951 = vmatprep.subr.mxu0 %v86
    %952 = vmatpush1.msra.mxu0 %v85
    %953 = vmatprep.subr.mxu0 %v88
    %954 = vmatpush1.msra.mxu0 %v87
    %955 = vmatprep.subr.mxu0 %v110
    %956 = vmatpush1.msra.mxu0 %v107
    %957 = vmatprep.mubr.f32.mxu0 %v891
    %958 = vmatmul.mubr.f32.gmra.mrb[0].mxu0 %v888
    %v959 = vpop.f32.mrb[0].mxu0
    %v960 = vadd.f32 0.0, %v959
    %v961 = vpop.f32.mrb[0].mxu0
    %v962 = vadd.f32 0.0, %v961
    %963 = vdwg.mxu0
    %v964 = vmax.f32 %v877, %v960
    %v965 = vmax.f32 %v878, %v962
    %s966 = scalar_lea.vmem %s0, 40
    %v967 = vld [vmem:[%s966] sm:$0xf]
    %v970 = vunpack.c.l.s4 1983009808
    %v971 = vunpack.c.0.s8 %v970
    %v972 = vlaneseq
    %v973 = vshrl.u32 %v972, 7
    %v974 = vsub.s32 %v971, %v973
    %v975 = vrot.slane %v967, %v974
    %v976 = vcombine.high %v975, %v975
    %v978 = vsel %vm102, %v976, 0
    %980 = vmatprep.subr.mxu0 %v28
    %981 = vmatpush1.msra.mxu0 %v27
    %982 = vmatprep.subr.mxu0 %v30
    %983 = vmatpush1.msra.mxu0 %v29
    %984 = vmatprep.subr.mxu0 %v32
    %985 = vmatpush1.msra.mxu0 %v31
    %986 = vmatprep.subr.mxu0 %v34
    %987 = vmatpush1.msra.mxu0 %v33
    %988 = vmatprep.subr.mxu0 %v36
    %989 = vmatpush1.msra.mxu0 %v35
    %990 = vmatprep.subr.mxu0 %v38
    %991 = vmatpush1.msra.mxu0 %v37
    %992 = vmatprep.subr.mxu0 %v40
    %993 = vmatpush1.msra.mxu0 %v39
    %994 = vmatprep.subr.mxu0 %v42
    %995 = vmatpush1.msra.mxu0 %v41
    %996 = vmatprep.subr.mxu0 %v44
    %997 = vmatpush1.msra.mxu0 %v43
    %998 = vmatprep.subr.mxu0 %v46
    %999 = vmatpush1.msra.mxu0 %v45
    %1000 = vmatprep.subr.mxu0 %v48
    %1001 = vmatpush1.msra.mxu0 %v47
    %1002 = vmatprep.subr.mxu0 %v50
    %1003 = vmatpush1.msra.mxu0 %v49
    %1004 = vmatprep.subr.mxu0 %v52
    %1005 = vmatpush1.msra.mxu0 %v51
    %1006 = vmatprep.subr.mxu0 %v54
    %1007 = vmatpush1.msra.mxu0 %v53
    %1008 = vmatprep.subr.mxu0 %v56
    %1009 = vmatpush1.msra.mxu0 %v55
    %1010 = vmatprep.subr.mxu0 %v58
    %1011 = vmatpush1.msra.mxu0 %v57
    %1012 = vmatprep.subr.mxu0 %v60
    %1013 = vmatpush1.msra.mxu0 %v59
    %1014 = vmatprep.subr.mxu0 %v62
    %1015 = vmatpush1.msra.mxu0 %v61
    %1016 = vmatprep.subr.mxu0 %v64
    %1017 = vmatpush1.msra.mxu0 %v63
    %1018 = vmatprep.subr.mxu0 %v66
    %1019 = vmatpush1.msra.mxu0 %v65
    %1020 = vmatprep.subr.mxu0 %v68
    %1021 = vmatpush1.msra.mxu0 %v67
    %1022 = vmatprep.subr.mxu0 %v70
    %1023 = vmatpush1.msra.mxu0 %v69
    %1024 = vmatprep.subr.mxu0 %v72
    %1025 = vmatpush1.msra.mxu0 %v71
    %1026 = vmatprep.subr.mxu0 %v74
    %1027 = vmatpush1.msra.mxu0 %v73
    %1028 = vmatprep.subr.mxu0 %v76
    %1029 = vmatpush1.msra.mxu0 %v75
    %1030 = vmatprep.subr.mxu0 %v78
    %1031 = vmatpush1.msra.mxu0 %v77
    %1032 = vmatprep.subr.mxu0 %v80
    %1033 = vmatpush1.msra.mxu0 %v79
    %1034 = vmatprep.subr.mxu0 %v82
    %1035 = vmatpush1.msra.mxu0 %v81
    %1036 = vmatprep.subr.mxu0 %v84
    %1037 = vmatpush1.msra.mxu0 %v83
    %1038 = vmatprep.subr.mxu0 %v86
    %1039 = vmatpush1.msra.mxu0 %v85
    %1040 = vmatprep.subr.mxu0 %v88
    %1041 = vmatpush1.msra.mxu0 %v87
    %1042 = vmatprep.subr.mxu0 %v110
    %1043 = vmatpush1.msra.mxu0 %v107
    %1044 = vmatprep.mubr.f32.mxu0 %v978
    %1045 = vmatmul.mubr.f32.gmra.mrb[0].mxu0 %v975
    %v1046 = vpop.f32.mrb[0].mxu0
    %v1047 = vadd.f32 0.0, %v1046
    %v1048 = vpop.f32.mrb[0].mxu0
    %v1049 = vadd.f32 0.0, %v1048
    %1050 = vdwg.mxu0
    %v1051 = vmax.f32 %v964, %v1047
    %v1052 = vmax.f32 %v965, %v1049
    %s1053 = scalar_lea.vmem %s0, 44
    %v1054 = vld [vmem:[%s1053] sm:$0xf]
    %v1057 = vunpack.c.l.s4 1983009808
    %v1058 = vunpack.c.0.s8 %v1057
    %v1059 = vlaneseq
    %v1060 = vshrl.u32 %v1059, 7
    %v1061 = vsub.s32 %v1058, %v1060
    %v1062 = vrot.slane %v1054, %v1061
    %v1063 = vcombine.high %v1062, %v1062
    %v1065 = vsel %vm102, %v1063, 0
    %1067 = vmatprep.subr.mxu0 %v28
    %1068 = vmatpush1.msra.mxu0 %v27
    %1069 = vmatprep.subr.mxu0 %v30
    %1070 = vmatpush1.msra.mxu0 %v29
    %1071 = vmatprep.subr.mxu0 %v32
    %1072 = vmatpush1.msra.mxu0 %v31
    %1073 = vmatprep.subr.mxu0 %v34
    %1074 = vmatpush1.msra.mxu0 %v33
    %1075 = vmatprep.subr.mxu0 %v36
    %1076 = vmatpush1.msra.mxu0 %v35
    %1077 = vmatprep.subr.mxu0 %v38
    %1078 = vmatpush1.msra.mxu0 %v37
    %1079 = vmatprep.subr.mxu0 %v40
    %1080 = vmatpush1.msra.mxu0 %v39
    %1081 = vmatprep.subr.mxu0 %v42
    %1082 = vmatpush1.msra.mxu0 %v41
    %1083 = vmatprep.subr.mxu0 %v44
    %1084 = vmatpush1.msra.mxu0 %v43
    %1085 = vmatprep.subr.mxu0 %v46
    %1086 = vmatpush1.msra.mxu0 %v45
    %1087 = vmatprep.subr.mxu0 %v48
    %1088 = vmatpush1.msra.mxu0 %v47
    %1089 = vmatprep.subr.mxu0 %v50
    %1090 = vmatpush1.msra.mxu0 %v49
    %1091 = vmatprep.subr.mxu0 %v52
    %1092 = vmatpush1.msra.mxu0 %v51
    %1093 = vmatprep.subr.mxu0 %v54
    %1094 = vmatpush1.msra.mxu0 %v53
    %1095 = vmatprep.subr.mxu0 %v56
    %1096 = vmatpush1.msra.mxu0 %v55
    %1097 = vmatprep.subr.mxu0 %v58
    %1098 = vmatpush1.msra.mxu0 %v57
    %1099 = vmatprep.subr.mxu0 %v60
    %1100 = vmatpush1.msra.mxu0 %v59
    %1101 = vmatprep.subr.mxu0 %v62
    %1102 = vmatpush1.msra.mxu0 %v61
    %1103 = vmatprep.subr.mxu0 %v64
    %1104 = vmatpush1.msra.mxu0 %v63
    %1105 = vmatprep.subr.mxu0 %v66
    %1106 = vmatpush1.msra.mxu0 %v65
    %1107 = vmatprep.subr.mxu0 %v68
    %1108 = vmatpush1.msra.mxu0 %v67
    %1109 = vmatprep.subr.mxu0 %v70
    %1110 = vmatpush1.msra.mxu0 %v69
    %1111 = vmatprep.subr.mxu0 %v72
    %1112 = vmatpush1.msra.mxu0 %v71
    %1113 = vmatprep.subr.mxu0 %v74
    %1114 = vmatpush1.msra.mxu0 %v73
    %1115 = vmatprep.subr.mxu0 %v76
    %1116 = vmatpush1.msra.mxu0 %v75
    %1117 = vmatprep.subr.mxu0 %v78
    %1118 = vmatpush1.msra.mxu0 %v77
    %1119 = vmatprep.subr.mxu0 %v80
    %1120 = vmatpush1.msra.mxu0 %v79
    %1121 = vmatprep.subr.mxu0 %v82
    %1122 = vmatpush1.msra.mxu0 %v81
    %1123 = vmatprep.subr.mxu0 %v84
    %1124 = vmatpush1.msra.mxu0 %v83
    %1125 = vmatprep.subr.mxu0 %v86
    %1126 = vmatpush1.msra.mxu0 %v85
    %1127 = vmatprep.subr.mxu0 %v88
    %1128 = vmatpush1.msra.mxu0 %v87
    %1129 = vmatprep.subr.mxu0 %v110
    %1130 = vmatpush1.msra.mxu0 %v107
    %1131 = vmatprep.mubr.f32.mxu0 %v1065
    %1132 = vmatmul.mubr.f32.gmra.mrb[0].mxu0 %v1062
    %v1133 = vpop.f32.mrb[0].mxu0
    %v1134 = vadd.f32 0.0, %v1133
    %v1135 = vpop.f32.mrb[0].mxu0
    %v1136 = vadd.f32 0.0, %v1135
    %1137 = vdwg.mxu0
    %v1138 = vmax.f32 %v1051, %v1134
    %v1139 = vmax.f32 %v1052, %v1136
    %s1140 = scalar_lea.vmem %s0, 48
    %v1141 = vld [vmem:[%s1140] sm:$0xf]
    %v1144 = vunpack.c.l.s4 1983009808
    %v1145 = vunpack.c.0.s8 %v1144
    %v1146 = vlaneseq
    %v1147 = vshrl.u32 %v1146, 7
    %v1148 = vsub.s32 %v1145, %v1147
    %v1149 = vrot.slane %v1141, %v1148
    %v1150 = vcombine.high %v1149, %v1149
    %v1152 = vsel %vm102, %v1150, 0
    %1154 = vmatprep.subr.mxu0 %v28
    %1155 = vmatpush1.msra.mxu0 %v27
    %1156 = vmatprep.subr.mxu0 %v30
    %1157 = vmatpush1.msra.mxu0 %v29
    %1158 = vmatprep.subr.mxu0 %v32
    %1159 = vmatpush1.msra.mxu0 %v31
    %1160 = vmatprep.subr.mxu0 %v34
    %1161 = vmatpush1.msra.mxu0 %v33
    %1162 = vmatprep.subr.mxu0 %v36
    %1163 = vmatpush1.msra.mxu0 %v35
    %1164 = vmatprep.subr.mxu0 %v38
    %1165 = vmatpush1.msra.mxu0 %v37
    %1166 = vmatprep.subr.mxu0 %v40
    %1167 = vmatpush1.msra.mxu0 %v39
    %1168 = vmatprep.subr.mxu0 %v42
    %1169 = vmatpush1.msra.mxu0 %v41
    %1170 = vmatprep.subr.mxu0 %v44
    %1171 = vmatpush1.msra.mxu0 %v43
    %1172 = vmatprep.subr.mxu0 %v46
    %1173 = vmatpush1.msra.mxu0 %v45
    %1174 = vmatprep.subr.mxu0 %v48
    %1175 = vmatpush1.msra.mxu0 %v47
    %1176 = vmatprep.subr.mxu0 %v50
    %1177 = vmatpush1.msra.mxu0 %v49
    %1178 = vmatprep.subr.mxu0 %v52
    %1179 = vmatpush1.msra.mxu0 %v51
    %1180 = vmatprep.subr.mxu0 %v54
    %1181 = vmatpush1.msra.mxu0 %v53
    %1182 = vmatprep.subr.mxu0 %v56
    %1183 = vmatpush1.msra.mxu0 %v55
    %1184 = vmatprep.subr.mxu0 %v58
    %1185 = vmatpush1.msra.mxu0 %v57
    %1186 = vmatprep.subr.mxu0 %v60
    %1187 = vmatpush1.msra.mxu0 %v59
    %1188 = vmatprep.subr.mxu0 %v62
    %1189 = vmatpush1.msra.mxu0 %v61
    %1190 = vmatprep.subr.mxu0 %v64
    %1191 = vmatpush1.msra.mxu0 %v63
    %1192 = vmatprep.subr.mxu0 %v66
    %1193 = vmatpush1.msra.mxu0 %v65
    %1194 = vmatprep.subr.mxu0 %v68
    %1195 = vmatpush1.msra.mxu0 %v67
    %1196 = vmatprep.subr.mxu0 %v70
    %1197 = vmatpush1.msra.mxu0 %v69
    %1198 = vmatprep.subr.mxu0 %v72
    %1199 = vmatpush1.msra.mxu0 %v71
    %1200 = vmatprep.subr.mxu0 %v74
    %1201 = vmatpush1.msra.mxu0 %v73
    %1202 = vmatprep.subr.mxu0 %v76
    %1203 = vmatpush1.msra.mxu0 %v75
    %1204 = vmatprep.subr.mxu0 %v78
    %1205 = vmatpush1.msra.mxu0 %v77
    %1206 = vmatprep.subr.mxu0 %v80
    %1207 = vmatpush1.msra.mxu0 %v79
    %1208 = vmatprep.subr.mxu0 %v82
    %1209 = vmatpush1.msra.mxu0 %v81
    %1210 = vmatprep.subr.mxu0 %v84
    %1211 = vmatpush1.msra.mxu0 %v83
    %1212 = vmatprep.subr.mxu0 %v86
    %1213 = vmatpush1.msra.mxu0 %v85
    %1214 = vmatprep.subr.mxu0 %v88
    %1215 = vmatpush1.msra.mxu0 %v87
    %1216 = vmatprep.subr.mxu0 %v110
    %1217 = vmatpush1.msra.mxu0 %v107
    %1218 = vmatprep.mubr.f32.mxu0 %v1152
    %1219 = vmatmul.mubr.f32.gmra.mrb[0].mxu0 %v1149
    %v1220 = vpop.f32.mrb[0].mxu0
    %v1221 = vadd.f32 0.0, %v1220
    %v1222 = vpop.f32.mrb[0].mxu0
    %v1223 = vadd.f32 0.0, %v1222
    %1224 = vdwg.mxu0
    %v1225 = vmax.f32 %v1138, %v1221
    %v1226 = vmax.f32 %v1139, %v1223
    %s1227 = scalar_lea.vmem %s0, 52
    %v1228 = vld [vmem:[%s1227] sm:$0xf]
    %v1231 = vunpack.c.l.s4 1983009808
    %v1232 = vunpack.c.0.s8 %v1231
    %v1233 = vlaneseq
    %v1234 = vshrl.u32 %v1233, 7
    %v1235 = vsub.s32 %v1232, %v1234
    %v1236 = vrot.slane %v1228, %v1235
    %v1237 = vcombine.high %v1236, %v1236
    %v1239 = vsel %vm102, %v1237, 0
    %1241 = vmatprep.subr.mxu0 %v28
    %1242 = vmatpush1.msra.mxu0 %v27
    %1243 = vmatprep.subr.mxu0 %v30
    %1244 = vmatpush1.msra.mxu0 %v29
    %1245 = vmatprep.subr.mxu0 %v32
    %1246 = vmatpush1.msra.mxu0 %v31
    %1247 = vmatprep.subr.mxu0 %v34
    %1248 = vmatpush1.msra.mxu0 %v33
    %1249 = vmatprep.subr.mxu0 %v36
    %1250 = vmatpush1.msra.mxu0 %v35
    %1251 = vmatprep.subr.mxu0 %v38
    %1252 = vmatpush1.msra.mxu0 %v37
    %1253 = vmatprep.subr.mxu0 %v40
    %1254 = vmatpush1.msra.mxu0 %v39
    %1255 = vmatprep.subr.mxu0 %v42
    %1256 = vmatpush1.msra.mxu0 %v41
    %1257 = vmatprep.subr.mxu0 %v44
    %1258 = vmatpush1.msra.mxu0 %v43
    %1259 = vmatprep.subr.mxu0 %v46
    %1260 = vmatpush1.msra.mxu0 %v45
    %1261 = vmatprep.subr.mxu0 %v48
    %1262 = vmatpush1.msra.mxu0 %v47
    %1263 = vmatprep.subr.mxu0 %v50
    %1264 = vmatpush1.msra.mxu0 %v49
    %1265 = vmatprep.subr.mxu0 %v52
    %1266 = vmatpush1.msra.mxu0 %v51
    %1267 = vmatprep.subr.mxu0 %v54
    %1268 = vmatpush1.msra.mxu0 %v53
    %1269 = vmatprep.subr.mxu0 %v56
    %1270 = vmatpush1.msra.mxu0 %v55
    %1271 = vmatprep.subr.mxu0 %v58
    %1272 = vmatpush1.msra.mxu0 %v57
    %1273 = vmatprep.subr.mxu0 %v60
    %1274 = vmatpush1.msra.mxu0 %v59
    %1275 = vmatprep.subr.mxu0 %v62
    %1276 = vmatpush1.msra.mxu0 %v61
    %1277 = vmatprep.subr.mxu0 %v64
    %1278 = vmatpush1.msra.mxu0 %v63
    %1279 = vmatprep.subr.mxu0 %v66
    %1280 = vmatpush1.msra.mxu0 %v65
    %1281 = vmatprep.subr.mxu0 %v68
    %1282 = vmatpush1.msra.mxu0 %v67
    %1283 = vmatprep.subr.mxu0 %v70
    %1284 = vmatpush1.msra.mxu0 %v69
    %1285 = vmatprep.subr.mxu0 %v72
    %1286 = vmatpush1.msra.mxu0 %v71
    %1287 = vmatprep.subr.mxu0 %v74
    %1288 = vmatpush1.msra.mxu0 %v73
    %1289 = vmatprep.subr.mxu0 %v76
    %1290 = vmatpush1.msra.mxu0 %v75
    %1291 = vmatprep.subr.mxu0 %v78
    %1292 = vmatpush1.msra.mxu0 %v77
    %1293 = vmatprep.subr.mxu0 %v80
    %1294 = vmatpush1.msra.mxu0 %v79
    %1295 = vmatprep.subr.mxu0 %v82
    %1296 = vmatpush1.msra.mxu0 %v81
    %1297 = vmatprep.subr.mxu0 %v84
    %1298 = vmatpush1.msra.mxu0 %v83
    %1299 = vmatprep.subr.mxu0 %v86
    %1300 = vmatpush1.msra.mxu0 %v85
    %1301 = vmatprep.subr.mxu0 %v88
    %1302 = vmatpush1.msra.mxu0 %v87
    %1303 = vmatprep.subr.mxu0 %v110
    %1304 = vmatpush1.msra.mxu0 %v107
    %1305 = vmatprep.mubr.f32.mxu0 %v1239
    %1306 = vmatmul.mubr.f32.gmra.mrb[0].mxu0 %v1236
    %v1307 = vpop.f32.mrb[0].mxu0
    %v1308 = vadd.f32 0.0, %v1307
    %v1309 = vpop.f32.mrb[0].mxu0
    %v1310 = vadd.f32 0.0, %v1309
    %1311 = vdwg.mxu0
    %v1312 = vmax.f32 %v1225, %v1308
    %v1313 = vmax.f32 %v1226, %v1310
    %s1314 = scalar_lea.vmem %s0, 56
    %v1315 = vld [vmem:[%s1314] sm:$0xf]
    %v1318 = vunpack.c.l.s4 1983009808
    %v1319 = vunpack.c.0.s8 %v1318
    %v1320 = vlaneseq
    %v1321 = vshrl.u32 %v1320, 7
    %v1322 = vsub.s32 %v1319, %v1321
    %v1323 = vrot.slane %v1315, %v1322
    %v1324 = vcombine.high %v1323, %v1323
    %v1326 = vsel %vm102, %v1324, 0
    %1328 = vmatprep.subr.mxu0 %v28
    %1329 = vmatpush1.msra.mxu0 %v27
    %1330 = vmatprep.subr.mxu0 %v30
    %1331 = vmatpush1.msra.mxu0 %v29
    %1332 = vmatprep.subr.mxu0 %v32
    %1333 = vmatpush1.msra.mxu0 %v31
    %1334 = vmatprep.subr.mxu0 %v34
    %1335 = vmatpush1.msra.mxu0 %v33
    %1336 = vmatprep.subr.mxu0 %v36
    %1337 = vmatpush1.msra.mxu0 %v35
    %1338 = vmatprep.subr.mxu0 %v38
    %1339 = vmatpush1.msra.mxu0 %v37
    %1340 = vmatprep.subr.mxu0 %v40
    %1341 = vmatpush1.msra.mxu0 %v39
    %1342 = vmatprep.subr.mxu0 %v42
    %1343 = vmatpush1.msra.mxu0 %v41
    %1344 = vmatprep.subr.mxu0 %v44
    %1345 = vmatpush1.msra.mxu0 %v43
    %1346 = vmatprep.subr.mxu0 %v46
    %1347 = vmatpush1.msra.mxu0 %v45
    %1348 = vmatprep.subr.mxu0 %v48
    %1349 = vmatpush1.msra.mxu0 %v47
    %1350 = vmatprep.subr.mxu0 %v50
    %1351 = vmatpush1.msra.mxu0 %v49
    %1352 = vmatprep.subr.mxu0 %v52
    %1353 = vmatpush1.msra.mxu0 %v51
    %1354 = vmatprep.subr.mxu0 %v54
    %1355 = vmatpush1.msra.mxu0 %v53
    %1356 = vmatprep.subr.mxu0 %v56
    %1357 = vmatpush1.msra.mxu0 %v55
    %1358 = vmatprep.subr.mxu0 %v58
    %1359 = vmatpush1.msra.mxu0 %v57
    %1360 = vmatprep.subr.mxu0 %v60
    %1361 = vmatpush1.msra.mxu0 %v59
    %1362 = vmatprep.subr.mxu0 %v62
    %1363 = vmatpush1.msra.mxu0 %v61
    %1364 = vmatprep.subr.mxu0 %v64
    %1365 = vmatpush1.msra.mxu0 %v63
    %1366 = vmatprep.subr.mxu0 %v66
    %1367 = vmatpush1.msra.mxu0 %v65
    %1368 = vmatprep.subr.mxu0 %v68
    %1369 = vmatpush1.msra.mxu0 %v67
    %1370 = vmatprep.subr.mxu0 %v70
    %1371 = vmatpush1.msra.mxu0 %v69
    %1372 = vmatprep.subr.mxu0 %v72
    %1373 = vmatpush1.msra.mxu0 %v71
    %1374 = vmatprep.subr.mxu0 %v74
    %1375 = vmatpush1.msra.mxu0 %v73
    %1376 = vmatprep.subr.mxu0 %v76
    %1377 = vmatpush1.msra.mxu0 %v75
    %1378 = vmatprep.subr.mxu0 %v78
    %1379 = vmatpush1.msra.mxu0 %v77
    %1380 = vmatprep.subr.mxu0 %v80
    %1381 = vmatpush1.msra.mxu0 %v79
    %1382 = vmatprep.subr.mxu0 %v82
    %1383 = vmatpush1.msra.mxu0 %v81
    %1384 = vmatprep.subr.mxu0 %v84
    %1385 = vmatpush1.msra.mxu0 %v83
    %1386 = vmatprep.subr.mxu0 %v86
    %1387 = vmatpush1.msra.mxu0 %v85
    %1388 = vmatprep.subr.mxu0 %v88
    %1389 = vmatpush1.msra.mxu0 %v87
    %1390 = vmatprep.subr.mxu0 %v110
    %1391 = vmatpush1.msra.mxu0 %v107
    %1392 = vmatprep.mubr.f32.mxu0 %v1326
    %1393 = vmatmul.mubr.f32.gmra.mrb[0].mxu0 %v1323
    %v1394 = vpop.f32.mrb[0].mxu0
    %v1395 = vadd.f32 0.0, %v1394
    %v1396 = vpop.f32.mrb[0].mxu0
    %v1397 = vadd.f32 0.0, %v1396
    %1398 = vdwg.mxu0
    %v1399 = vmax.f32 %v1312, %v1395
    %v1400 = vmax.f32 %v1313, %v1397
    %s1401 = scalar_lea.vmem %s0, 60
    %v1402 = vld [vmem:[%s1401] sm:$0xf]
    %v1405 = vunpack.c.l.s4 1983009808
    %v1406 = vunpack.c.0.s8 %v1405
    %v1407 = vlaneseq
    %v1408 = vshrl.u32 %v1407, 7
    %v1409 = vsub.s32 %v1406, %v1408
    %v1410 = vrot.slane %v1402, %v1409
    %v1411 = vcombine.high %v1410, %v1410
    %v1413 = vsel %vm102, %v1411, 0
    %1415 = vmatprep.subr.mxu0 %v28
    %1416 = vmatpush1.msra.mxu0 %v27
    %1417 = vmatprep.subr.mxu0 %v30
    %1418 = vmatpush1.msra.mxu0 %v29
    %1419 = vmatprep.subr.mxu0 %v32
    %1420 = vmatpush1.msra.mxu0 %v31
    %1421 = vmatprep.subr.mxu0 %v34
    %1422 = vmatpush1.msra.mxu0 %v33
    %1423 = vmatprep.subr.mxu0 %v36
    %1424 = vmatpush1.msra.mxu0 %v35
    %1425 = vmatprep.subr.mxu0 %v38
    %1426 = vmatpush1.msra.mxu0 %v37
    %1427 = vmatprep.subr.mxu0 %v40
    %1428 = vmatpush1.msra.mxu0 %v39
    %1429 = vmatprep.subr.mxu0 %v42
    %1430 = vmatpush1.msra.mxu0 %v41
    %1431 = vmatprep.subr.mxu0 %v44
    %1432 = vmatpush1.msra.mxu0 %v43
    %1433 = vmatprep.subr.mxu0 %v46
    %1434 = vmatpush1.msra.mxu0 %v45
    %1435 = vmatprep.subr.mxu0 %v48
    %1436 = vmatpush1.msra.mxu0 %v47
    %1437 = vmatprep.subr.mxu0 %v50
    %1438 = vmatpush1.msra.mxu0 %v49
    %1439 = vmatprep.subr.mxu0 %v52
    %1440 = vmatpush1.msra.mxu0 %v51
    %1441 = vmatprep.subr.mxu0 %v54
    %1442 = vmatpush1.msra.mxu0 %v53
    %1443 = vmatprep.subr.mxu0 %v56
    %1444 = vmatpush1.msra.mxu0 %v55
    %1445 = vmatprep.subr.mxu0 %v58
    %1446 = vmatpush1.msra.mxu0 %v57
    %1447 = vmatprep.subr.mxu0 %v60
    %1448 = vmatpush1.msra.mxu0 %v59
    %1449 = vmatprep.subr.mxu0 %v62
    %1450 = vmatpush1.msra.mxu0 %v61
    %1451 = vmatprep.subr.mxu0 %v64
    %1452 = vmatpush1.msra.mxu0 %v63
    %1453 = vmatprep.subr.mxu0 %v66
    %1454 = vmatpush1.msra.mxu0 %v65
    %1455 = vmatprep.subr.mxu0 %v68
    %1456 = vmatpush1.msra.mxu0 %v67
    %1457 = vmatprep.subr.mxu0 %v70
    %1458 = vmatpush1.msra.mxu0 %v69
    %1459 = vmatprep.subr.mxu0 %v72
    %1460 = vmatpush1.msra.mxu0 %v71
    %1461 = vmatprep.subr.mxu0 %v74
    %1462 = vmatpush1.msra.mxu0 %v73
    %1463 = vmatprep.subr.mxu0 %v76
    %1464 = vmatpush1.msra.mxu0 %v75
    %1465 = vmatprep.subr.mxu0 %v78
    %1466 = vmatpush1.msra.mxu0 %v77
    %1467 = vmatprep.subr.mxu0 %v80
    %1468 = vmatpush1.msra.mxu0 %v79
    %1469 = vmatprep.subr.mxu0 %v82
    %1470 = vmatpush1.msra.mxu0 %v81
    %1471 = vmatprep.subr.mxu0 %v84
    %1472 = vmatpush1.msra.mxu0 %v83
    %1473 = vmatprep.subr.mxu0 %v86
    %1474 = vmatpush1.msra.mxu0 %v85
    %1475 = vmatprep.subr.mxu0 %v88
    %1476 = vmatpush1.msra.mxu0 %v87
    %1477 = vmatprep.subr.mxu0 %v110
    %1478 = vmatpush1.msra.mxu0 %v107
    %1479 = vmatprep.mubr.f32.mxu0 %v1413
    %1480 = vmatmul.mubr.f32.gmra.mrb[0].mxu0 %v1410
    %v1481 = vpop.f32.mrb[0].mxu0
    %v1482 = vadd.f32 0.0, %v1481
    %v1483 = vpop.f32.mrb[0].mxu0
    %v1484 = vadd.f32 0.0, %v1483
    %1485 = vdwg.mxu0
    %v1486 = vmax.f32 %v1399, %v1482
    %v1487 = vmax.f32 %v1400, %v1484
    %s1488 = scalar_lea.vmem %s0, 64
    %v1489 = vld [vmem:[%s1488] sm:$0xf]
    %v1492 = vunpack.c.l.s4 1983009808
    %v1493 = vunpack.c.0.s8 %v1492
    %v1494 = vlaneseq
    %v1495 = vshrl.u32 %v1494, 7
    %v1496 = vsub.s32 %v1493, %v1495
    %v1497 = vrot.slane %v1489, %v1496
    %v1498 = vcombine.high %v1497, %v1497
    %v1500 = vsel %vm102, %v1498, 0
    %1502 = vmatprep.subr.mxu0 %v28
    %1503 = vmatpush1.msra.mxu0 %v27
    %1504 = vmatprep.subr.mxu0 %v30
    %1505 = vmatpush1.msra.mxu0 %v29
    %1506 = vmatprep.subr.mxu0 %v32
    %1507 = vmatpush1.msra.mxu0 %v31
    %1508 = vmatprep.subr.mxu0 %v34
    %1509 = vmatpush1.msra.mxu0 %v33
    %1510 = vmatprep.subr.mxu0 %v36
    %1511 = vmatpush1.msra.mxu0 %v35
    %1512 = vmatprep.subr.mxu0 %v38
    %1513 = vmatpush1.msra.mxu0 %v37
    %1514 = vmatprep.subr.mxu0 %v40
    %1515 = vmatpush1.msra.mxu0 %v39
    %1516 = vmatprep.subr.mxu0 %v42
    %1517 = vmatpush1.msra.mxu0 %v41
    %1518 = vmatprep.subr.mxu0 %v44
    %1519 = vmatpush1.msra.mxu0 %v43
    %1520 = vmatprep.subr.mxu0 %v46
    %1521 = vmatpush1.msra.mxu0 %v45
    %1522 = vmatprep.subr.mxu0 %v48
    %1523 = vmatpush1.msra.mxu0 %v47
    %1524 = vmatprep.subr.mxu0 %v50
    %1525 = vmatpush1.msra.mxu0 %v49
    %1526 = vmatprep.subr.mxu0 %v52
    %1527 = vmatpush1.msra.mxu0 %v51
    %1528 = vmatprep.subr.mxu0 %v54
    %1529 = vmatpush1.msra.mxu0 %v53
    %1530 = vmatprep.subr.mxu0 %v56
    %1531 = vmatpush1.msra.mxu0 %v55
    %1532 = vmatprep.subr.mxu0 %v58
    %1533 = vmatpush1.msra.mxu0 %v57
    %1534 = vmatprep.subr.mxu0 %v60
    %1535 = vmatpush1.msra.mxu0 %v59
    %1536 = vmatprep.subr.mxu0 %v62
    %1537 = vmatpush1.msra.mxu0 %v61
    %1538 = vmatprep.subr.mxu0 %v64
    %1539 = vmatpush1.msra.mxu0 %v63
    %1540 = vmatprep.subr.mxu0 %v66
    %1541 = vmatpush1.msra.mxu0 %v65
    %1542 = vmatprep.subr.mxu0 %v68
    %1543 = vmatpush1.msra.mxu0 %v67
    %1544 = vmatprep.subr.mxu0 %v70
    %1545 = vmatpush1.msra.mxu0 %v69
    %1546 = vmatprep.subr.mxu0 %v72
    %1547 = vmatpush1.msra.mxu0 %v71
    %1548 = vmatprep.subr.mxu0 %v74
    %1549 = vmatpush1.msra.mxu0 %v73
    %1550 = vmatprep.subr.mxu0 %v76
    %1551 = vmatpush1.msra.mxu0 %v75
    %1552 = vmatprep.subr.mxu0 %v78
    %1553 = vmatpush1.msra.mxu0 %v77
    %1554 = vmatprep.subr.mxu0 %v80
    %1555 = vmatpush1.msra.mxu0 %v79
    %1556 = vmatprep.subr.mxu0 %v82
    %1557 = vmatpush1.msra.mxu0 %v81
    %1558 = vmatprep.subr.mxu0 %v84
    %1559 = vmatpush1.msra.mxu0 %v83
    %1560 = vmatprep.subr.mxu0 %v86
    %1561 = vmatpush1.msra.mxu0 %v85
    %1562 = vmatprep.subr.mxu0 %v88
    %1563 = vmatpush1.msra.mxu0 %v87
    %1564 = vmatprep.subr.mxu0 %v110
    %1565 = vmatpush1.msra.mxu0 %v107
    %1566 = vmatprep.mubr.f32.mxu0 %v1500
    %1567 = vmatmul.mubr.f32.gmra.mrb[0].mxu0 %v1497
    %v1568 = vpop.f32.mrb[0].mxu0
    %v1569 = vadd.f32 0.0, %v1568
    %v1570 = vpop.f32.mrb[0].mxu0
    %v1571 = vadd.f32 0.0, %v1570
    %1572 = vdwg.mxu0
    %v1573 = vmax.f32 %v1486, %v1569
    %v1574 = vmax.f32 %v1487, %v1571
    %s1575 = scalar_lea.vmem %s0, 68
    %v1576 = vld [vmem:[%s1575] sm:$0xf]
    %v1579 = vunpack.c.l.s4 1983009808
    %v1580 = vunpack.c.0.s8 %v1579
    %v1581 = vlaneseq
    %v1582 = vshrl.u32 %v1581, 7
    %v1583 = vsub.s32 %v1580, %v1582
    %v1584 = vrot.slane %v1576, %v1583
    %v1585 = vcombine.high %v1584, %v1584
    %v1587 = vsel %vm102, %v1585, 0
    %1589 = vmatprep.subr.mxu0 %v28
    %1590 = vmatpush1.msra.mxu0 %v27
    %1591 = vmatprep.subr.mxu0 %v30
    %1592 = vmatpush1.msra.mxu0 %v29
    %1593 = vmatprep.subr.mxu0 %v32
    %1594 = vmatpush1.msra.mxu0 %v31
    %1595 = vmatprep.subr.mxu0 %v34
    %1596 = vmatpush1.msra.mxu0 %v33
    %1597 = vmatprep.subr.mxu0 %v36
    %1598 = vmatpush1.msra.mxu0 %v35
    %1599 = vmatprep.subr.mxu0 %v38
    %1600 = vmatpush1.msra.mxu0 %v37
    %1601 = vmatprep.subr.mxu0 %v40
    %1602 = vmatpush1.msra.mxu0 %v39
    %1603 = vmatprep.subr.mxu0 %v42
    %1604 = vmatpush1.msra.mxu0 %v41
    %1605 = vmatprep.subr.mxu0 %v44
    %1606 = vmatpush1.msra.mxu0 %v43
    %1607 = vmatprep.subr.mxu0 %v46
    %1608 = vmatpush1.msra.mxu0 %v45
    %1609 = vmatprep.subr.mxu0 %v48
    %1610 = vmatpush1.msra.mxu0 %v47
    %1611 = vmatprep.subr.mxu0 %v50
    %1612 = vmatpush1.msra.mxu0 %v49
    %1613 = vmatprep.subr.mxu0 %v52
    %1614 = vmatpush1.msra.mxu0 %v51
    %1615 = vmatprep.subr.mxu0 %v54
    %1616 = vmatpush1.msra.mxu0 %v53
    %1617 = vmatprep.subr.mxu0 %v56
    %1618 = vmatpush1.msra.mxu0 %v55
    %1619 = vmatprep.subr.mxu0 %v58
    %1620 = vmatpush1.msra.mxu0 %v57
    %1621 = vmatprep.subr.mxu0 %v60
    %1622 = vmatpush1.msra.mxu0 %v59
    %1623 = vmatprep.subr.mxu0 %v62
    %1624 = vmatpush1.msra.mxu0 %v61
    %1625 = vmatprep.subr.mxu0 %v64
    %1626 = vmatpush1.msra.mxu0 %v63
    %1627 = vmatprep.subr.mxu0 %v66
    %1628 = vmatpush1.msra.mxu0 %v65
    %1629 = vmatprep.subr.mxu0 %v68
    %1630 = vmatpush1.msra.mxu0 %v67
    %1631 = vmatprep.subr.mxu0 %v70
    %1632 = vmatpush1.msra.mxu0 %v69
    %1633 = vmatprep.subr.mxu0 %v72
    %1634 = vmatpush1.msra.mxu0 %v71
    %1635 = vmatprep.subr.mxu0 %v74
    %1636 = vmatpush1.msra.mxu0 %v73
    %1637 = vmatprep.subr.mxu0 %v76
    %1638 = vmatpush1.msra.mxu0 %v75
    %1639 = vmatprep.subr.mxu0 %v78
    %1640 = vmatpush1.msra.mxu0 %v77
    %1641 = vmatprep.subr.mxu0 %v80
    %1642 = vmatpush1.msra.mxu0 %v79
    %1643 = vmatprep.subr.mxu0 %v82
    %1644 = vmatpush1.msra.mxu0 %v81
    %1645 = vmatprep.subr.mxu0 %v84
    %1646 = vmatpush1.msra.mxu0 %v83
    %1647 = vmatprep.subr.mxu0 %v86
    %1648 = vmatpush1.msra.mxu0 %v85
    %1649 = vmatprep.subr.mxu0 %v88
    %1650 = vmatpush1.msra.mxu0 %v87
    %1651 = vmatprep.subr.mxu0 %v110
    %1652 = vmatpush1.msra.mxu0 %v107
    %1653 = vmatprep.mubr.f32.mxu0 %v1587
    %1654 = vmatmul.mubr.f32.gmra.mrb[0].mxu0 %v1584
    %v1655 = vpop.f32.mrb[0].mxu0
    %v1656 = vadd.f32 0.0, %v1655
    %v1657 = vpop.f32.mrb[0].mxu0
    %v1658 = vadd.f32 0.0, %v1657
    %1659 = vdwg.mxu0
    %v1660 = vmax.f32 %v1573, %v1656
    %v1661 = vmax.f32 %v1574, %v1658
    %s1662 = scalar_lea.vmem %s0, 72
    %v1663 = vld [vmem:[%s1662] sm:$0xf]
    %v1666 = vunpack.c.l.s4 1983009808
    %v1667 = vunpack.c.0.s8 %v1666
    %v1668 = vlaneseq
    %v1669 = vshrl.u32 %v1668, 7
    %v1670 = vsub.s32 %v1667, %v1669
    %v1671 = vrot.slane %v1663, %v1670
    %v1672 = vcombine.high %v1671, %v1671
    %v1674 = vsel %vm102, %v1672, 0
    %1676 = vmatprep.subr.mxu0 %v28
    %1677 = vmatpush1.msra.mxu0 %v27
    %1678 = vmatprep.subr.mxu0 %v30
    %1679 = vmatpush1.msra.mxu0 %v29
    %1680 = vmatprep.subr.mxu0 %v32
    %1681 = vmatpush1.msra.mxu0 %v31
    %1682 = vmatprep.subr.mxu0 %v34
    %1683 = vmatpush1.msra.mxu0 %v33
    %1684 = vmatprep.subr.mxu0 %v36
    %1685 = vmatpush1.msra.mxu0 %v35
    %1686 = vmatprep.subr.mxu0 %v38
    %1687 = vmatpush1.msra.mxu0 %v37
    %1688 = vmatprep.subr.mxu0 %v40
    %1689 = vmatpush1.msra.mxu0 %v39
    %1690 = vmatprep.subr.mxu0 %v42
    %1691 = vmatpush1.msra.mxu0 %v41
    %1692 = vmatprep.subr.mxu0 %v44
    %1693 = vmatpush1.msra.mxu0 %v43
    %1694 = vmatprep.subr.mxu0 %v46
    %1695 = vmatpush1.msra.mxu0 %v45
    %1696 = vmatprep.subr.mxu0 %v48
    %1697 = vmatpush1.msra.mxu0 %v47
    %1698 = vmatprep.subr.mxu0 %v50
    %1699 = vmatpush1.msra.mxu0 %v49
    %1700 = vmatprep.subr.mxu0 %v52
    %1701 = vmatpush1.msra.mxu0 %v51
    %1702 = vmatprep.subr.mxu0 %v54
    %1703 = vmatpush1.msra.mxu0 %v53
    %1704 = vmatprep.subr.mxu0 %v56
    %1705 = vmatpush1.msra.mxu0 %v55
    %1706 = vmatprep.subr.mxu0 %v58
    %1707 = vmatpush1.msra.mxu0 %v57
    %1708 = vmatprep.subr.mxu0 %v60
    %1709 = vmatpush1.msra.mxu0 %v59
    %1710 = vmatprep.subr.mxu0 %v62
    %1711 = vmatpush1.msra.mxu0 %v61
    %1712 = vmatprep.subr.mxu0 %v64
    %1713 = vmatpush1.msra.mxu0 %v63
    %1714 = vmatprep.subr.mxu0 %v66
    %1715 = vmatpush1.msra.mxu0 %v65
    %1716 = vmatprep.subr.mxu0 %v68
    %1717 = vmatpush1.msra.mxu0 %v67
    %1718 = vmatprep.subr.mxu0 %v70
    %1719 = vmatpush1.msra.mxu0 %v69
    %1720 = vmatprep.subr.mxu0 %v72
    %1721 = vmatpush1.msra.mxu0 %v71
    %1722 = vmatprep.subr.mxu0 %v74
    %1723 = vmatpush1.msra.mxu0 %v73
    %1724 = vmatprep.subr.mxu0 %v76
    %1725 = vmatpush1.msra.mxu0 %v75
    %1726 = vmatprep.subr.mxu0 %v78
    %1727 = vmatpush1.msra.mxu0 %v77
    %1728 = vmatprep.subr.mxu0 %v80
    %1729 = vmatpush1.msra.mxu0 %v79
    %1730 = vmatprep.subr.mxu0 %v82
    %1731 = vmatpush1.msra.mxu0 %v81
    %1732 = vmatprep.subr.mxu0 %v84
    %1733 = vmatpush1.msra.mxu0 %v83
    %1734 = vmatprep.subr.mxu0 %v86
    %1735 = vmatpush1.msra.mxu0 %v85
    %1736 = vmatprep.subr.mxu0 %v88
    %1737 = vmatpush1.msra.mxu0 %v87
    %1738 = vmatprep.subr.mxu0 %v110
    %1739 = vmatpush1.msra.mxu0 %v107
    %1740 = vmatprep.mubr.f32.mxu0 %v1674
    %1741 = vmatmul.mubr.f32.gmra.mrb[0].mxu0 %v1671
    %v1742 = vpop.f32.mrb[0].mxu0
    %v1743 = vadd.f32 0.0, %v1742
    %v1744 = vpop.f32.mrb[0].mxu0
    %v1745 = vadd.f32 0.0, %v1744
    %1746 = vdwg.mxu0
    %v1747 = vmax.f32 %v1660, %v1743
    %v1748 = vmax.f32 %v1661, %v1745
    %s1749 = scalar_lea.vmem %s0, 76
    %v1750 = vld [vmem:[%s1749] sm:$0xf]
    %v1753 = vunpack.c.l.s4 1983009808
    %v1754 = vunpack.c.0.s8 %v1753
    %v1755 = vlaneseq
    %v1756 = vshrl.u32 %v1755, 7
    %v1757 = vsub.s32 %v1754, %v1756
    %v1758 = vrot.slane %v1750, %v1757
    %v1759 = vcombine.high %v1758, %v1758
    %v1761 = vsel %vm102, %v1759, 0
    %1763 = vmatprep.subr.mxu0 %v28
    %1764 = vmatpush1.msra.mxu0 %v27
    %1765 = vmatprep.subr.mxu0 %v30
    %1766 = vmatpush1.msra.mxu0 %v29
    %1767 = vmatprep.subr.mxu0 %v32
    %1768 = vmatpush1.msra.mxu0 %v31
    %1769 = vmatprep.subr.mxu0 %v34
    %1770 = vmatpush1.msra.mxu0 %v33
    %1771 = vmatprep.subr.mxu0 %v36
    %1772 = vmatpush1.msra.mxu0 %v35
    %1773 = vmatprep.subr.mxu0 %v38
    %1774 = vmatpush1.msra.mxu0 %v37
    %1775 = vmatprep.subr.mxu0 %v40
    %1776 = vmatpush1.msra.mxu0 %v39
    %1777 = vmatprep.subr.mxu0 %v42
    %1778 = vmatpush1.msra.mxu0 %v41
    %1779 = vmatprep.subr.mxu0 %v44
    %1780 = vmatpush1.msra.mxu0 %v43
    %1781 = vmatprep.subr.mxu0 %v46
    %1782 = vmatpush1.msra.mxu0 %v45
    %1783 = vmatprep.subr.mxu0 %v48
    %1784 = vmatpush1.msra.mxu0 %v47
    %1785 = vmatprep.subr.mxu0 %v50
    %1786 = vmatpush1.msra.mxu0 %v49
    %1787 = vmatprep.subr.mxu0 %v52
    %1788 = vmatpush1.msra.mxu0 %v51
    %1789 = vmatprep.subr.mxu0 %v54
    %1790 = vmatpush1.msra.mxu0 %v53
    %1791 = vmatprep.subr.mxu0 %v56
    %1792 = vmatpush1.msra.mxu0 %v55
    %1793 = vmatprep.subr.mxu0 %v58
    %1794 = vmatpush1.msra.mxu0 %v57
    %1795 = vmatprep.subr.mxu0 %v60
    %1796 = vmatpush1.msra.mxu0 %v59
    %1797 = vmatprep.subr.mxu0 %v62
    %1798 = vmatpush1.msra.mxu0 %v61
    %1799 = vmatprep.subr.mxu0 %v64
    %1800 = vmatpush1.msra.mxu0 %v63
    %1801 = vmatprep.subr.mxu0 %v66
    %1802 = vmatpush1.msra.mxu0 %v65
    %1803 = vmatprep.subr.mxu0 %v68
    %1804 = vmatpush1.msra.mxu0 %v67
    %1805 = vmatprep.subr.mxu0 %v70
    %1806 = vmatpush1.msra.mxu0 %v69
    %1807 = vmatprep.subr.mxu0 %v72
    %1808 = vmatpush1.msra.mxu0 %v71
    %1809 = vmatprep.subr.mxu0 %v74
    %1810 = vmatpush1.msra.mxu0 %v73
    %1811 = vmatprep.subr.mxu0 %v76
    %1812 = vmatpush1.msra.mxu0 %v75
    %1813 = vmatprep.subr.mxu0 %v78
    %1814 = vmatpush1.msra.mxu0 %v77
    %1815 = vmatprep.subr.mxu0 %v80
    %1816 = vmatpush1.msra.mxu0 %v79
    %1817 = vmatprep.subr.mxu0 %v82
    %1818 = vmatpush1.msra.mxu0 %v81
    %1819 = vmatprep.subr.mxu0 %v84
    %1820 = vmatpush1.msra.mxu0 %v83
    %1821 = vmatprep.subr.mxu0 %v86
    %1822 = vmatpush1.msra.mxu0 %v85
    %1823 = vmatprep.subr.mxu0 %v88
    %1824 = vmatpush1.msra.mxu0 %v87
    %1825 = vmatprep.subr.mxu0 %v110
    %1826 = vmatpush1.msra.mxu0 %v107
    %1827 = vmatprep.mubr.f32.mxu0 %v1761
    %1828 = vmatmul.mubr.f32.gmra.mrb[0].mxu0 %v1758
    %v1829 = vpop.f32.mrb[0].mxu0
    %v1830 = vadd.f32 0.0, %v1829
    %v1831 = vpop.f32.mrb[0].mxu0
    %v1832 = vadd.f32 0.0, %v1831
    %1833 = vdwg.mxu0
    %v1834 = vmax.f32 %v1747, %v1830
    %v1835 = vmax.f32 %v1748, %v1832
    %s1836 = scalar_lea.vmem %s0, 80
    %v1837 = vld [vmem:[%s1836] sm:$0xf]
    %v1840 = vunpack.c.l.s4 1983009808
    %v1841 = vunpack.c.0.s8 %v1840
    %v1842 = vlaneseq
    %v1843 = vshrl.u32 %v1842, 7
    %v1844 = vsub.s32 %v1841, %v1843
    %v1845 = vrot.slane %v1837, %v1844
    %v1846 = vcombine.high %v1845, %v1845
    %v1848 = vsel %vm102, %v1846, 0
    %1850 = vmatprep.subr.mxu0 %v28
    %1851 = vmatpush1.msra.mxu0 %v27
    %1852 = vmatprep.subr.mxu0 %v30
    %1853 = vmatpush1.msra.mxu0 %v29
    %1854 = vmatprep.subr.mxu0 %v32
    %1855 = vmatpush1.msra.mxu0 %v31
    %1856 = vmatprep.subr.mxu0 %v34
    %1857 = vmatpush1.msra.mxu0 %v33
    %1858 = vmatprep.subr.mxu0 %v36
    %1859 = vmatpush1.msra.mxu0 %v35
    %1860 = vmatprep.subr.mxu0 %v38
    %1861 = vmatpush1.msra.mxu0 %v37
    %1862 = vmatprep.subr.mxu0 %v40
    %1863 = vmatpush1.msra.mxu0 %v39
    %1864 = vmatprep.subr.mxu0 %v42
    %1865 = vmatpush1.msra.mxu0 %v41
    %1866 = vmatprep.subr.mxu0 %v44
    %1867 = vmatpush1.msra.mxu0 %v43
    %1868 = vmatprep.subr.mxu0 %v46
    %1869 = vmatpush1.msra.mxu0 %v45
    %1870 = vmatprep.subr.mxu0 %v48
    %1871 = vmatpush1.msra.mxu0 %v47
    %1872 = vmatprep.subr.mxu0 %v50
    %1873 = vmatpush1.msra.mxu0 %v49
    %1874 = vmatprep.subr.mxu0 %v52
    %1875 = vmatpush1.msra.mxu0 %v51
    %1876 = vmatprep.subr.mxu0 %v54
    %1877 = vmatpush1.msra.mxu0 %v53
    %1878 = vmatprep.subr.mxu0 %v56
    %1879 = vmatpush1.msra.mxu0 %v55
    %1880 = vmatprep.subr.mxu0 %v58
    %1881 = vmatpush1.msra.mxu0 %v57
    %1882 = vmatprep.subr.mxu0 %v60
    %1883 = vmatpush1.msra.mxu0 %v59
    %1884 = vmatprep.subr.mxu0 %v62
    %1885 = vmatpush1.msra.mxu0 %v61
    %1886 = vmatprep.subr.mxu0 %v64
    %1887 = vmatpush1.msra.mxu0 %v63
    %1888 = vmatprep.subr.mxu0 %v66
    %1889 = vmatpush1.msra.mxu0 %v65
    %1890 = vmatprep.subr.mxu0 %v68
    %1891 = vmatpush1.msra.mxu0 %v67
    %1892 = vmatprep.subr.mxu0 %v70
    %1893 = vmatpush1.msra.mxu0 %v69
    %1894 = vmatprep.subr.mxu0 %v72
    %1895 = vmatpush1.msra.mxu0 %v71
    %1896 = vmatprep.subr.mxu0 %v74
    %1897 = vmatpush1.msra.mxu0 %v73
    %1898 = vmatprep.subr.mxu0 %v76
    %1899 = vmatpush1.msra.mxu0 %v75
    %1900 = vmatprep.subr.mxu0 %v78
    %1901 = vmatpush1.msra.mxu0 %v77
    %1902 = vmatprep.subr.mxu0 %v80
    %1903 = vmatpush1.msra.mxu0 %v79
    %1904 = vmatprep.subr.mxu0 %v82
    %1905 = vmatpush1.msra.mxu0 %v81
    %1906 = vmatprep.subr.mxu0 %v84
    %1907 = vmatpush1.msra.mxu0 %v83
    %1908 = vmatprep.subr.mxu0 %v86
    %1909 = vmatpush1.msra.mxu0 %v85
    %1910 = vmatprep.subr.mxu0 %v88
    %1911 = vmatpush1.msra.mxu0 %v87
    %1912 = vmatprep.subr.mxu0 %v110
    %1913 = vmatpush1.msra.mxu0 %v107
    %1914 = vmatprep.mubr.f32.mxu0 %v1848
    %1915 = vmatmul.mubr.f32.gmra.mrb[0].mxu0 %v1845
    %v1916 = vpop.f32.mrb[0].mxu0
    %v1917 = vadd.f32 0.0, %v1916
    %v1918 = vpop.f32.mrb[0].mxu0
    %v1919 = vadd.f32 0.0, %v1918
    %1920 = vdwg.mxu0
    %v1921 = vmax.f32 %v1834, %v1917
    %v1922 = vmax.f32 %v1835, %v1919
    %s1923 = scalar_lea.vmem %s0, 84
    %v1924 = vld [vmem:[%s1923] sm:$0xf]
    %v1927 = vunpack.c.l.s4 1983009808
    %v1928 = vunpack.c.0.s8 %v1927
    %v1929 = vlaneseq
    %v1930 = vshrl.u32 %v1929, 7
    %v1931 = vsub.s32 %v1928, %v1930
    %v1932 = vrot.slane %v1924, %v1931
    %v1933 = vcombine.high %v1932, %v1932
    %v1935 = vsel %vm102, %v1933, 0
    %1937 = vmatprep.subr.mxu0 %v28
    %1938 = vmatpush1.msra.mxu0 %v27
    %1939 = vmatprep.subr.mxu0 %v30
    %1940 = vmatpush1.msra.mxu0 %v29
    %1941 = vmatprep.subr.mxu0 %v32
    %1942 = vmatpush1.msra.mxu0 %v31
    %1943 = vmatprep.subr.mxu0 %v34
    %1944 = vmatpush1.msra.mxu0 %v33
    %1945 = vmatprep.subr.mxu0 %v36
    %1946 = vmatpush1.msra.mxu0 %v35
    %1947 = vmatprep.subr.mxu0 %v38
    %1948 = vmatpush1.msra.mxu0 %v37
    %1949 = vmatprep.subr.mxu0 %v40
    %1950 = vmatpush1.msra.mxu0 %v39
    %1951 = vmatprep.subr.mxu0 %v42
    %1952 = vmatpush1.msra.mxu0 %v41
    %1953 = vmatprep.subr.mxu0 %v44
    %1954 = vmatpush1.msra.mxu0 %v43
    %1955 = vmatprep.subr.mxu0 %v46
    %1956 = vmatpush1.msra.mxu0 %v45
    %1957 = vmatprep.subr.mxu0 %v48
    %1958 = vmatpush1.msra.mxu0 %v47
    %1959 = vmatprep.subr.mxu0 %v50
    %1960 = vmatpush1.msra.mxu0 %v49
    %1961 = vmatprep.subr.mxu0 %v52
    %1962 = vmatpush1.msra.mxu0 %v51
    %1963 = vmatprep.subr.mxu0 %v54
    %1964 = vmatpush1.msra.mxu0 %v53
    %1965 = vmatprep.subr.mxu0 %v56
    %1966 = vmatpush1.msra.mxu0 %v55
    %1967 = vmatprep.subr.mxu0 %v58
    %1968 = vmatpush1.msra.mxu0 %v57
    %1969 = vmatprep.subr.mxu0 %v60
    %1970 = vmatpush1.msra.mxu0 %v59
    %1971 = vmatprep.subr.mxu0 %v62
    %1972 = vmatpush1.msra.mxu0 %v61
    %1973 = vmatprep.subr.mxu0 %v64
    %1974 = vmatpush1.msra.mxu0 %v63
    %1975 = vmatprep.subr.mxu0 %v66
    %1976 = vmatpush1.msra.mxu0 %v65
    %1977 = vmatprep.subr.mxu0 %v68
    %1978 = vmatpush1.msra.mxu0 %v67
    %1979 = vmatprep.subr.mxu0 %v70
    %1980 = vmatpush1.msra.mxu0 %v69
    %1981 = vmatprep.subr.mxu0 %v72
    %1982 = vmatpush1.msra.mxu0 %v71
    %1983 = vmatprep.subr.mxu0 %v74
    %1984 = vmatpush1.msra.mxu0 %v73
    %1985 = vmatprep.subr.mxu0 %v76
    %1986 = vmatpush1.msra.mxu0 %v75
    %1987 = vmatprep.subr.mxu0 %v78
    %1988 = vmatpush1.msra.mxu0 %v77
    %1989 = vmatprep.subr.mxu0 %v80
    %1990 = vmatpush1.msra.mxu0 %v79
    %1991 = vmatprep.subr.mxu0 %v82
    %1992 = vmatpush1.msra.mxu0 %v81
    %1993 = vmatprep.subr.mxu0 %v84
    %1994 = vmatpush1.msra.mxu0 %v83
    %1995 = vmatprep.subr.mxu0 %v86
    %1996 = vmatpush1.msra.mxu0 %v85
    %1997 = vmatprep.subr.mxu0 %v88
    %1998 = vmatpush1.msra.mxu0 %v87
    %1999 = vmatprep.subr.mxu0 %v110
    %2000 = vmatpush1.msra.mxu0 %v107
    %2001 = vmatprep.mubr.f32.mxu0 %v1935
    %2002 = vmatmul.mubr.f32.gmra.mrb[0].mxu0 %v1932
    %v2003 = vpop.f32.mrb[0].mxu0
    %v2004 = vadd.f32 0.0, %v2003
    %v2005 = vpop.f32.mrb[0].mxu0
    %v2006 = vadd.f32 0.0, %v2005
    %2007 = vdwg.mxu0
    %v2008 = vmax.f32 %v1921, %v2004
    %v2009 = vmax.f32 %v1922, %v2006
    %s2010 = scalar_lea.vmem %s0, 88
    %v2011 = vld [vmem:[%s2010] sm:$0xf]
    %v2014 = vunpack.c.l.s4 1983009808
    %v2015 = vunpack.c.0.s8 %v2014
    %v2016 = vlaneseq
    %v2017 = vshrl.u32 %v2016, 7
    %v2018 = vsub.s32 %v2015, %v2017
    %v2019 = vrot.slane %v2011, %v2018
    %v2020 = vcombine.high %v2019, %v2019
    %v2022 = vsel %vm102, %v2020, 0
    %2024 = vmatprep.subr.mxu0 %v28
    %2025 = vmatpush1.msra.mxu0 %v27
    %2026 = vmatprep.subr.mxu0 %v30
    %2027 = vmatpush1.msra.mxu0 %v29
    %2028 = vmatprep.subr.mxu0 %v32
    %2029 = vmatpush1.msra.mxu0 %v31
    %2030 = vmatprep.subr.mxu0 %v34
    %2031 = vmatpush1.msra.mxu0 %v33
    %2032 = vmatprep.subr.mxu0 %v36
    %2033 = vmatpush1.msra.mxu0 %v35
    %2034 = vmatprep.subr.mxu0 %v38
    %2035 = vmatpush1.msra.mxu0 %v37
    %2036 = vmatprep.subr.mxu0 %v40
    %2037 = vmatpush1.msra.mxu0 %v39
    %2038 = vmatprep.subr.mxu0 %v42
    %2039 = vmatpush1.msra.mxu0 %v41
    %2040 = vmatprep.subr.mxu0 %v44
    %2041 = vmatpush1.msra.mxu0 %v43
    %2042 = vmatprep.subr.mxu0 %v46
    %2043 = vmatpush1.msra.mxu0 %v45
    %2044 = vmatprep.subr.mxu0 %v48
    %2045 = vmatpush1.msra.mxu0 %v47
    %2046 = vmatprep.subr.mxu0 %v50
    %2047 = vmatpush1.msra.mxu0 %v49
    %2048 = vmatprep.subr.mxu0 %v52
    %2049 = vmatpush1.msra.mxu0 %v51
    %2050 = vmatprep.subr.mxu0 %v54
    %2051 = vmatpush1.msra.mxu0 %v53
    %2052 = vmatprep.subr.mxu0 %v56
    %2053 = vmatpush1.msra.mxu0 %v55
    %2054 = vmatprep.subr.mxu0 %v58
    %2055 = vmatpush1.msra.mxu0 %v57
    %2056 = vmatprep.subr.mxu0 %v60
    %2057 = vmatpush1.msra.mxu0 %v59
    %2058 = vmatprep.subr.mxu0 %v62
    %2059 = vmatpush1.msra.mxu0 %v61
    %2060 = vmatprep.subr.mxu0 %v64
    %2061 = vmatpush1.msra.mxu0 %v63
    %2062 = vmatprep.subr.mxu0 %v66
    %2063 = vmatpush1.msra.mxu0 %v65
    %2064 = vmatprep.subr.mxu0 %v68
    %2065 = vmatpush1.msra.mxu0 %v67
    %2066 = vmatprep.subr.mxu0 %v70
    %2067 = vmatpush1.msra.mxu0 %v69
    %2068 = vmatprep.subr.mxu0 %v72
    %2069 = vmatpush1.msra.mxu0 %v71
    %2070 = vmatprep.subr.mxu0 %v74
    %2071 = vmatpush1.msra.mxu0 %v73
    %2072 = vmatprep.subr.mxu0 %v76
    %2073 = vmatpush1.msra.mxu0 %v75
    %2074 = vmatprep.subr.mxu0 %v78
    %2075 = vmatpush1.msra.mxu0 %v77
    %2076 = vmatprep.subr.mxu0 %v80
    %2077 = vmatpush1.msra.mxu0 %v79
    %2078 = vmatprep.subr.mxu0 %v82
    %2079 = vmatpush1.msra.mxu0 %v81
    %2080 = vmatprep.subr.mxu0 %v84
    %2081 = vmatpush1.msra.mxu0 %v83
    %2082 = vmatprep.subr.mxu0 %v86
    %2083 = vmatpush1.msra.mxu0 %v85
    %2084 = vmatprep.subr.mxu0 %v88
    %2085 = vmatpush1.msra.mxu0 %v87
    %2086 = vmatprep.subr.mxu0 %v110
    %2087 = vmatpush1.msra.mxu0 %v107
    %2088 = vmatprep.mubr.f32.mxu0 %v2022
    %2089 = vmatmul.mubr.f32.gmra.mrb[0].mxu0 %v2019
    %v2090 = vpop.f32.mrb[0].mxu0
    %v2091 = vadd.f32 0.0, %v2090
    %v2092 = vpop.f32.mrb[0].mxu0
    %v2093 = vadd.f32 0.0, %v2092
    %2094 = vdwg.mxu0
    %v2095 = vmax.f32 %v2008, %v2091
    %v2096 = vmax.f32 %v2009, %v2093
    %s2097 = scalar_lea.vmem %s0, 92
    %v2098 = vld [vmem:[%s2097] sm:$0xf]
    %v2101 = vunpack.c.l.s4 1983009808
    %v2102 = vunpack.c.0.s8 %v2101
    %v2103 = vlaneseq
    %v2104 = vshrl.u32 %v2103, 7
    %v2105 = vsub.s32 %v2102, %v2104
    %v2106 = vrot.slane %v2098, %v2105
    %v2107 = vcombine.high %v2106, %v2106
    %v2109 = vsel %vm102, %v2107, 0
    %2111 = vmatprep.subr.mxu0 %v28
    %2112 = vmatpush1.msra.mxu0 %v27
    %2113 = vmatprep.subr.mxu0 %v30
    %2114 = vmatpush1.msra.mxu0 %v29
    %2115 = vmatprep.subr.mxu0 %v32
    %2116 = vmatpush1.msra.mxu0 %v31
    %2117 = vmatprep.subr.mxu0 %v34
    %2118 = vmatpush1.msra.mxu0 %v33
    %2119 = vmatprep.subr.mxu0 %v36
    %2120 = vmatpush1.msra.mxu0 %v35
    %2121 = vmatprep.subr.mxu0 %v38
    %2122 = vmatpush1.msra.mxu0 %v37
    %2123 = vmatprep.subr.mxu0 %v40
    %2124 = vmatpush1.msra.mxu0 %v39
    %2125 = vmatprep.subr.mxu0 %v42
    %2126 = vmatpush1.msra.mxu0 %v41
    %2127 = vmatprep.subr.mxu0 %v44
    %2128 = vmatpush1.msra.mxu0 %v43
    %2129 = vmatprep.subr.mxu0 %v46
    %2130 = vmatpush1.msra.mxu0 %v45
    %2131 = vmatprep.subr.mxu0 %v48
    %2132 = vmatpush1.msra.mxu0 %v47
    %2133 = vmatprep.subr.mxu0 %v50
    %2134 = vmatpush1.msra.mxu0 %v49
    %2135 = vmatprep.subr.mxu0 %v52
    %2136 = vmatpush1.msra.mxu0 %v51
    %2137 = vmatprep.subr.mxu0 %v54
    %2138 = vmatpush1.msra.mxu0 %v53
    %2139 = vmatprep.subr.mxu0 %v56
    %2140 = vmatpush1.msra.mxu0 %v55
    %2141 = vmatprep.subr.mxu0 %v58
    %2142 = vmatpush1.msra.mxu0 %v57
    %2143 = vmatprep.subr.mxu0 %v60
    %2144 = vmatpush1.msra.mxu0 %v59
    %2145 = vmatprep.subr.mxu0 %v62
    %2146 = vmatpush1.msra.mxu0 %v61
    %2147 = vmatprep.subr.mxu0 %v64
    %2148 = vmatpush1.msra.mxu0 %v63
    %2149 = vmatprep.subr.mxu0 %v66
    %2150 = vmatpush1.msra.mxu0 %v65
    %2151 = vmatprep.subr.mxu0 %v68
    %2152 = vmatpush1.msra.mxu0 %v67
    %2153 = vmatprep.subr.mxu0 %v70
    %2154 = vmatpush1.msra.mxu0 %v69
    %2155 = vmatprep.subr.mxu0 %v72
    %2156 = vmatpush1.msra.mxu0 %v71
    %2157 = vmatprep.subr.mxu0 %v74
    %2158 = vmatpush1.msra.mxu0 %v73
    %2159 = vmatprep.subr.mxu0 %v76
    %2160 = vmatpush1.msra.mxu0 %v75
    %2161 = vmatprep.subr.mxu0 %v78
    %2162 = vmatpush1.msra.mxu0 %v77
    %2163 = vmatprep.subr.mxu0 %v80
    %2164 = vmatpush1.msra.mxu0 %v79
    %2165 = vmatprep.subr.mxu0 %v82
    %2166 = vmatpush1.msra.mxu0 %v81
    %2167 = vmatprep.subr.mxu0 %v84
    %2168 = vmatpush1.msra.mxu0 %v83
    %2169 = vmatprep.subr.mxu0 %v86
    %2170 = vmatpush1.msra.mxu0 %v85
    %2171 = vmatprep.subr.mxu0 %v88
    %2172 = vmatpush1.msra.mxu0 %v87
    %2173 = vmatprep.subr.mxu0 %v110
    %2174 = vmatpush1.msra.mxu0 %v107
    %2175 = vmatprep.mubr.f32.mxu0 %v2109
    %2176 = vmatmul.mubr.f32.gmra.mrb[0].mxu0 %v2106
    %v2177 = vpop.f32.mrb[0].mxu0
    %v2178 = vadd.f32 0.0, %v2177
    %v2179 = vpop.f32.mrb[0].mxu0
    %v2180 = vadd.f32 0.0, %v2179
    %2181 = vdwg.mxu0
    %v2182 = vmax.f32 %v2095, %v2178
    %v2183 = vmax.f32 %v2096, %v2180
    %s2184 = scalar_lea.vmem %s0, 96
    %v2185 = vld [vmem:[%s2184] sm:$0xf]
    %v2188 = vunpack.c.l.s4 1983009808
    %v2189 = vunpack.c.0.s8 %v2188
    %v2190 = vlaneseq
    %v2191 = vshrl.u32 %v2190, 7
    %v2192 = vsub.s32 %v2189, %v2191
    %v2193 = vrot.slane %v2185, %v2192
    %v2194 = vcombine.high %v2193, %v2193
    %v2196 = vsel %vm102, %v2194, 0
    %2198 = vmatprep.subr.mxu0 %v28
    %2199 = vmatpush1.msra.mxu0 %v27
    %2200 = vmatprep.subr.mxu0 %v30
    %2201 = vmatpush1.msra.mxu0 %v29
    %2202 = vmatprep.subr.mxu0 %v32
    %2203 = vmatpush1.msra.mxu0 %v31
    %2204 = vmatprep.subr.mxu0 %v34
    %2205 = vmatpush1.msra.mxu0 %v33
    %2206 = vmatprep.subr.mxu0 %v36
    %2207 = vmatpush1.msra.mxu0 %v35
    %2208 = vmatprep.subr.mxu0 %v38
    %2209 = vmatpush1.msra.mxu0 %v37
    %2210 = vmatprep.subr.mxu0 %v40
    %2211 = vmatpush1.msra.mxu0 %v39
    %2212 = vmatprep.subr.mxu0 %v42
    %2213 = vmatpush1.msra.mxu0 %v41
    %2214 = vmatprep.subr.mxu0 %v44
    %2215 = vmatpush1.msra.mxu0 %v43
    %2216 = vmatprep.subr.mxu0 %v46
    %2217 = vmatpush1.msra.mxu0 %v45
    %2218 = vmatprep.subr.mxu0 %v48
    %2219 = vmatpush1.msra.mxu0 %v47
    %2220 = vmatprep.subr.mxu0 %v50
    %2221 = vmatpush1.msra.mxu0 %v49
    %2222 = vmatprep.subr.mxu0 %v52
    %2223 = vmatpush1.msra.mxu0 %v51
    %2224 = vmatprep.subr.mxu0 %v54
    %2225 = vmatpush1.msra.mxu0 %v53
    %2226 = vmatprep.subr.mxu0 %v56
    %2227 = vmatpush1.msra.mxu0 %v55
    %2228 = vmatprep.subr.mxu0 %v58
    %2229 = vmatpush1.msra.mxu0 %v57
    %2230 = vmatprep.subr.mxu0 %v60
    %2231 = vmatpush1.msra.mxu0 %v59
    %2232 = vmatprep.subr.mxu0 %v62
    %2233 = vmatpush1.msra.mxu0 %v61
    %2234 = vmatprep.subr.mxu0 %v64
    %2235 = vmatpush1.msra.mxu0 %v63
    %2236 = vmatprep.subr.mxu0 %v66
    %2237 = vmatpush1.msra.mxu0 %v65
    %2238 = vmatprep.subr.mxu0 %v68
    %2239 = vmatpush1.msra.mxu0 %v67
    %2240 = vmatprep.subr.mxu0 %v70
    %2241 = vmatpush1.msra.mxu0 %v69
    %2242 = vmatprep.subr.mxu0 %v72
    %2243 = vmatpush1.msra.mxu0 %v71
    %2244 = vmatprep.subr.mxu0 %v74
    %2245 = vmatpush1.msra.mxu0 %v73
    %2246 = vmatprep.subr.mxu0 %v76
    %2247 = vmatpush1.msra.mxu0 %v75
    %2248 = vmatprep.subr.mxu0 %v78
    %2249 = vmatpush1.msra.mxu0 %v77
    %2250 = vmatprep.subr.mxu0 %v80
    %2251 = vmatpush1.msra.mxu0 %v79
    %2252 = vmatprep.subr.mxu0 %v82
    %2253 = vmatpush1.msra.mxu0 %v81
    %2254 = vmatprep.subr.mxu0 %v84
    %2255 = vmatpush1.msra.mxu0 %v83
    %2256 = vmatprep.subr.mxu0 %v86
    %2257 = vmatpush1.msra.mxu0 %v85
    %2258 = vmatprep.subr.mxu0 %v88
    %2259 = vmatpush1.msra.mxu0 %v87
    %2260 = vmatprep.subr.mxu0 %v110
    %2261 = vmatpush1.msra.mxu0 %v107
    %2262 = vmatprep.mubr.f32.mxu0 %v2196
    %2263 = vmatmul.mubr.f32.gmra.mrb[0].mxu0 %v2193
    %v2264 = vpop.f32.mrb[0].mxu0
    %v2265 = vadd.f32 0.0, %v2264
    %v2266 = vpop.f32.mrb[0].mxu0
    %v2267 = vadd.f32 0.0, %v2266
    %2268 = vdwg.mxu0
    %v2269 = vmax.f32 %v2182, %v2265
    %v2270 = vmax.f32 %v2183, %v2267
    %v2271 = vld [vmem:[%s2] sm:$0x3]
    %v2273 = vlaneseq
    %v2274 = vshrl.u32 %v2273, 7
    %v2275 = vsub.s32 0, %v2274
    %v2276 = vrot.slane %v2271, %v2275
    %v2277 = vlaneseq
    %v2278 = vshrl.u32 %v2277, 7
    %v2279 = vsub.s32 1, %v2278
    %v2280 = vrot.slane %v2271, %v2279
    %v2283 = vadd.f32 %v2269, %v2276
    %v2284 = vadd.f32 %v2270, %v2280
    %v2285 = vmax.f32 %v2283, 0.0
    %v2286 = vmax.f32 %v2284, 0.0
    %v2287 = vld [vmem:[%s3] sm:$0xff]
    %v2288 = vld [vmem:[%s3 + $0x8] sm:$0xff]
    %v2289 = vld [vmem:[%s3 + $0x10] sm:$0xff]
    %v2290 = vld [vmem:[%s3 + $0x18] sm:$0xff]
    %v2291 = vld [vmem:[%s3 + $0x20] sm:$0xff]
    %v2292 = vld [vmem:[%s3 + $0x28] sm:$0xff]
    %v2293 = vld [vmem:[%s3 + $0x30] sm:$0xff]
    %v2294 = vld [vmem:[%s3 + $0x38] sm:$0xff]
    %v2295 = vld [vmem:[%s3 + $0x40] sm:$0xff]
    %v2296 = vld [vmem:[%s3 + $0x48] sm:$0xff]
    %v2297 = vld [vmem:[%s3 + $0x50] sm:$0xff]
    %v2298 = vld [vmem:[%s3 + $0x58] sm:$0xff]
    %v2299 = vld [vmem:[%s3 + $0x60] sm:$0xff]
    %v2300 = vld [vmem:[%s3 + $0x68] sm:$0xff]
    %v2301 = vld [vmem:[%s3 + $0x70] sm:$0xff]
    %v2302 = vld [vmem:[%s3 + $0x78] sm:$0xff]
    %v2303 = vld [vmem:[%s3 + $0x80] sm:$0xff]
    %v2304 = vld [vmem:[%s3 + $0x88] sm:$0xff]
    %v2305 = vld [vmem:[%s3 + $0x90] sm:$0xff]
    %v2306 = vld [vmem:[%s3 + $0x98] sm:$0xff]
    %v2307 = vld [vmem:[%s3 + $0xa0] sm:$0xff]
    %v2308 = vld [vmem:[%s3 + $0xa8] sm:$0xff]
    %v2309 = vld [vmem:[%s3 + $0xb0] sm:$0xff]
    %v2310 = vld [vmem:[%s3 + $0xb8] sm:$0xff]
    %v2311 = vld [vmem:[%s3 + $0xc0] sm:$0xff]
    %v2312 = vld [vmem:[%s3 + $0xc8] sm:$0xff]
    %v2313 = vld [vmem:[%s3 + $0xd0] sm:$0xff]
    %v2314 = vld [vmem:[%s3 + $0xd8] sm:$0xff]
    %v2315 = vld [vmem:[%s3 + $0xe0] sm:$0xff]
    %v2316 = vld [vmem:[%s3 + $0xe8] sm:$0xff]
    %v2317 = vld [vmem:[%s3 + $0xf0] sm:$0xff]
    %v2318 = vld [vmem:[%s3 + $0xf8] sm:$0xff]
    %v2319 = vld [vmem:[%s3 + $0x100] sm:$0xff]
    %v2320 = vld [vmem:[%s3 + $0x108] sm:$0xff]
    %v2321 = vld [vmem:[%s3 + $0x110] sm:$0xff]
    %v2322 = vld [vmem:[%s3 + $0x118] sm:$0xff]
    %v2323 = vld [vmem:[%s3 + $0x120] sm:$0xff]
    %v2324 = vld [vmem:[%s3 + $0x128] sm:$0xff]
    %v2325 = vld [vmem:[%s3 + $0x130] sm:$0xff]
    %v2326 = vld [vmem:[%s3 + $0x138] sm:$0xff]
    %v2327 = vld [vmem:[%s3 + $0x140] sm:$0xff]
    %v2328 = vld [vmem:[%s3 + $0x148] sm:$0xff]
    %v2329 = vld [vmem:[%s3 + $0x150] sm:$0xff]
    %v2330 = vld [vmem:[%s3 + $0x158] sm:$0xff]
    %v2331 = vld [vmem:[%s3 + $0x160] sm:$0xff]
    %v2332 = vld [vmem:[%s3 + $0x168] sm:$0xff]
    %v2333 = vld [vmem:[%s3 + $0x170] sm:$0xff]
    %v2334 = vld [vmem:[%s3 + $0x178] sm:$0xff]
    %v2335 = vld [vmem:[%s3 + $0x180] sm:$0xff]
    %v2336 = vld [vmem:[%s3 + $0x188] sm:$0xff]
    %v2337 = vld [vmem:[%s3 + $0x190] sm:$0xff]
    %v2338 = vld [vmem:[%s3 + $0x198] sm:$0xff]
    %v2339 = vld [vmem:[%s3 + $0x1a0] sm:$0xff]
    %v2340 = vld [vmem:[%s3 + $0x1a8] sm:$0xff]
    %v2341 = vld [vmem:[%s3 + $0x1b0] sm:$0xff]
    %v2342 = vld [vmem:[%s3 + $0x1b8] sm:$0xff]
    %v2343 = vld [vmem:[%s3 + $0x1c0] sm:$0xff]
    %v2344 = vld [vmem:[%s3 + $0x1c8] sm:$0xff]
    %v2345 = vld [vmem:[%s3 + $0x1d0] sm:$0xff]
    %v2346 = vld [vmem:[%s3 + $0x1d8] sm:$0xff]
    %v2347 = vld [vmem:[%s3 + $0x1e0] sm:$0xff]
    %v2348 = vld [vmem:[%s3 + $0x1e8] sm:$0xff]
    %v2349 = vld [vmem:[%s3 + $0x1f0] sm:$0xff]
    %v2350 = vld [vmem:[%s3 + $0x1f8] sm:$0xff]
    %v2351 = vld [vmem:[%s3 + $0x200] sm:$0xff]
    %v2352 = vld [vmem:[%s3 + $0x208] sm:$0xff]
    %v2353 = vld [vmem:[%s3 + $0x210] sm:$0xff]
    %v2354 = vld [vmem:[%s3 + $0x218] sm:$0xff]
    %v2355 = vld [vmem:[%s3 + $0x220] sm:$0xff]
    %v2356 = vld [vmem:[%s3 + $0x228] sm:$0xff]
    %v2357 = vld [vmem:[%s3 + $0x230] sm:$0xff]
    %v2358 = vld [vmem:[%s3 + $0x238] sm:$0xff]
    %v2359 = vld [vmem:[%s3 + $0x240] sm:$0xff]
    %v2360 = vld [vmem:[%s3 + $0x248] sm:$0xff]
    %v2361 = vld [vmem:[%s3 + $0x250] sm:$0xff]
    %v2362 = vld [vmem:[%s3 + $0x258] sm:$0xff]
    %v2363 = vld [vmem:[%s3 + $0x260] sm:$0xff]
    %v2364 = vld [vmem:[%s3 + $0x268] sm:$0xff]
    %v2365 = vld [vmem:[%s3 + $0x270] sm:$0xff]
    %v2366 = vld [vmem:[%s3 + $0x278] sm:$0xff]
    %v2367 = vld [vmem:[%s4] sm:$0xf]
    %v2369 = vlaneseq
    %v2370 = vshrl.u32 %v2369, 7
    %v2371 = vsub.s32 0, %v2370
    %v2372 = vrot.slane %v2367, %v2371
    %v2373 = vlaneseq
    %v2374 = vshrl.u32 %v2373, 7
    %v2375 = vsub.s32 1, %v2374
    %v2376 = vrot.slane %v2367, %v2375
    %v2377 = vlaneseq
    %v2378 = vshrl.u32 %v2377, 7
    %v2379 = vsub.s32 2, %v2378
    %v2380 = vrot.slane %v2367, %v2379
    %v2381 = vlaneseq
    %v2382 = vshrl.u32 %v2381, 7
    %v2383 = vsub.s32 3, %v2382
    %v2384 = vrot.slane %v2367, %v2383
    %vm2389 = vcmask 261120
    %v2391 = vsel %vm2389, %v2286, 0
    %2393 = vmatprep.subr.mxu0 %v2288
    %2394 = vmatpush1.msra.mxu0 %v2287
    %2395 = vmatprep.subr.mxu0 %v2292
    %2396 = vmatpush1.msra.mxu0 %v2291
    %2397 = vmatprep.subr.mxu0 %v2296
    %2398 = vmatpush1.msra.mxu0 %v2295
    %2399 = vmatprep.subr.mxu0 %v2300
    %2400 = vmatpush1.msra.mxu0 %v2299
    %2401 = vmatprep.subr.mxu0 %v2304
    %2402 = vmatpush1.msra.mxu0 %v2303
    %2403 = vmatprep.subr.mxu0 %v2308
    %2404 = vmatpush1.msra.mxu0 %v2307
    %2405 = vmatprep.subr.mxu0 %v2312
    %2406 = vmatpush1.msra.mxu0 %v2311
    %2407 = vmatprep.subr.mxu0 %v2316
    %2408 = vmatpush1.msra.mxu0 %v2315
    %2409 = vmatprep.subr.mxu0 %v2320
    %2410 = vmatpush1.msra.mxu0 %v2319
    %2411 = vmatprep.subr.mxu0 %v2324
    %2412 = vmatpush1.msra.mxu0 %v2323
    %2413 = vmatprep.subr.mxu0 %v2328
    %2414 = vmatpush1.msra.mxu0 %v2327
    %2415 = vmatprep.subr.mxu0 %v2332
    %2416 = vmatpush1.msra.mxu0 %v2331
    %2417 = vmatprep.subr.mxu0 %v2336
    %2418 = vmatpush1.msra.mxu0 %v2335
    %2419 = vmatprep.subr.mxu0 %v2340
    %2420 = vmatpush1.msra.mxu0 %v2339
    %2421 = vmatprep.subr.mxu0 %v2344
    %2422 = vmatpush1.msra.mxu0 %v2343
    %2423 = vmatprep.subr.mxu0 %v2348
    %2424 = vmatpush1.msra.mxu0 %v2347
    %2425 = vmatprep.subr.mxu0 %v2352
    %2426 = vmatpush1.msra.mxu0 %v2351
    %2427 = vmatprep.subr.mxu0 %v2356
    %2428 = vmatpush1.msra.mxu0 %v2355
    %2429 = vmatprep.subr.mxu0 %v2360
    %2430 = vmatpush1.msra.mxu0 %v2359
    %2431 = vmatprep.subr.mxu0 %v2364
    %2432 = vmatpush1.msra.mxu0 %v2363
    %2433 = vmatprep.subr.mxu0 0.0
    %2434 = vmatpush1.msra.mxu0 0.0
    %2435 = vmatprep.subr.mxu0 0.0
    %2436 = vmatpush1.msra.mxu0 0.0
    %2437 = vmatprep.subr.mxu0 0.0
    %2438 = vmatpush1.msra.mxu0 0.0
    %2439 = vmatprep.subr.mxu0 0.0
    %2440 = vmatpush1.msra.mxu0 0.0
    %2441 = vmatprep.subr.mxu0 0.0
    %2442 = vmatpush1.msra.mxu0 0.0
    %2443 = vmatprep.subr.mxu0 0.0
    %2444 = vmatpush1.msra.mxu0 0.0
    %2445 = vmatprep.subr.mxu0 0.0
    %2446 = vmatpush1.msra.mxu0 0.0
    %2447 = vmatprep.subr.mxu0 0.0
    %2448 = vmatpush1.msra.mxu0 0.0
    %2449 = vmatprep.subr.mxu0 0.0
    %2450 = vmatpush1.msra.mxu0 0.0
    %2451 = vmatprep.subr.mxu0 0.0
    %2452 = vmatpush1.msra.mxu0 0.0
    %2453 = vmatprep.subr.mxu0 0.0
    %2454 = vmatpush1.msra.mxu0 0.0
    %2455 = vmatprep.subr.mxu0 0.0
    %2456 = vmatpush1.msra.mxu0 0.0
    %2457 = vmatprep.mubr.f32.mxu0 %v2391
    %2458 = vmatmul.mubr.f32.gmra.mrb[0].mxu0 %v2285
    %v2459 = vpop.f32.mrb[0].mxu0
    %v2460 = vadd.f32 %v2372, %v2459
    %v2461 = vpop.f32.mrb[0].mxu0
    %v2462 = vadd.f32 %v2376, %v2461
    %2463 = vdwg.mxu0
    %2464 = vmatprep.subr.mxu0 %v2290
    %2465 = vmatpush1.msra.mxu0 %v2289
    %2466 = vmatprep.subr.mxu0 %v2294
    %2467 = vmatpush1.msra.mxu0 %v2293
    %2468 = vmatprep.subr.mxu0 %v2298
    %2469 = vmatpush1.msra.mxu0 %v2297
    %2470 = vmatprep.subr.mxu0 %v2302
    %2471 = vmatpush1.msra.mxu0 %v2301
    %2472 = vmatprep.subr.mxu0 %v2306
    %2473 = vmatpush1.msra.mxu0 %v2305
    %2474 = vmatprep.subr.mxu0 %v2310
    %2475 = vmatpush1.msra.mxu0 %v2309
    %2476 = vmatprep.subr.mxu0 %v2314
    %2477 = vmatpush1.msra.mxu0 %v2313
    %2478 = vmatprep.subr.mxu0 %v2318
    %2479 = vmatpush1.msra.mxu0 %v2317
    %2480 = vmatprep.subr.mxu0 %v2322
    %2481 = vmatpush1.msra.mxu0 %v2321
    %2482 = vmatprep.subr.mxu0 %v2326
    %2483 = vmatpush1.msra.mxu0 %v2325
    %2484 = vmatprep.subr.mxu0 %v2330
    %2485 = vmatpush1.msra.mxu0 %v2329
    %2486 = vmatprep.subr.mxu0 %v2334
    %2487 = vmatpush1.msra.mxu0 %v2333
    %2488 = vmatprep.subr.mxu0 %v2338
    %2489 = vmatpush1.msra.mxu0 %v2337
    %2490 = vmatprep.subr.mxu0 %v2342
    %2491 = vmatpush1.msra.mxu0 %v2341
    %2492 = vmatprep.subr.mxu0 %v2346
    %2493 = vmatpush1.msra.mxu0 %v2345
    %2494 = vmatprep.subr.mxu0 %v2350
    %2495 = vmatpush1.msra.mxu0 %v2349
    %2496 = vmatprep.subr.mxu0 %v2354
    %2497 = vmatpush1.msra.mxu0 %v2353
    %2498 = vmatprep.subr.mxu0 %v2358
    %2499 = vmatpush1.msra.mxu0 %v2357
    %2500 = vmatprep.subr.mxu0 %v2362
    %2501 = vmatpush1.msra.mxu0 %v2361
    %2502 = vmatprep.subr.mxu0 %v2366
    %2503 = vmatpush1.msra.mxu0 %v2365
    %2504 = vmatprep.subr.mxu0 0.0
    %2505 = vmatpush1.msra.mxu0 0.0
    %2506 = vmatprep.subr.mxu0 0.0
    %2507 = vmatpush1.msra.mxu0 0.0
    %2508 = vmatprep.subr.mxu0 0.0
    %2509 = vmatpush1.msra.mxu0 0.0
    %2510 = vmatprep.subr.mxu0 0.0
    %2511 = vmatpush1.msra.mxu0 0.0
    %2512 = vmatprep.subr.mxu0 0.0
    %2513 = vmatpush1.msra.mxu0 0.0
    %2514 = vmatprep.subr.mxu0 0.0
    %2515 = vmatpush1.msra.mxu0 0.0
    %2516 = vmatprep.subr.mxu0 0.0
    %2517 = vmatpush1.msra.mxu0 0.0
    %2518 = vmatprep.subr.mxu0 0.0
    %2519 = vmatpush1.msra.mxu0 0.0
    %2520 = vmatprep.subr.mxu0 0.0
    %2521 = vmatpush1.msra.mxu0 0.0
    %2522 = vmatprep.subr.mxu0 0.0
    %2523 = vmatpush1.msra.mxu0 0.0
    %2524 = vmatprep.subr.mxu0 0.0
    %2525 = vmatpush1.msra.mxu0 0.0
    %2526 = vmatprep.subr.mxu0 0.0
    %2527 = vmatpush1.msra.mxu0 0.0
    %2528 = vmatprep.mubr.f32.mxu0 %v2391
    %2529 = vmatmul.mubr.f32.gmra.mrb[0].mxu0 %v2285
    %v2530 = vpop.f32.mrb[0].mxu0
    %v2531 = vadd.f32 %v2380, %v2530
    %v2532 = vpop.f32.mrb[0].mxu0
    %v2533 = vadd.f32 %v2384, %v2532
    %2534 = vdwg.mxu0
    %v2535 = vld [vmem:[%s5] sm:$0xff]
    %v2536 = vld [vmem:[%s5 + $0x8] sm:$0xff]
    %v2537 = vld [vmem:[%s5 + $0x10] sm:$0xff]
    %v2538 = vld [vmem:[%s5 + $0x18] sm:$0xff]
    %v2539 = vld [vmem:[%s5 + $0x20] sm:$0xff]
    %v2540 = vld [vmem:[%s5 + $0x28] sm:$0xff]
    %v2541 = vld [vmem:[%s5 + $0x30] sm:$0xff]
    %v2542 = vld [vmem:[%s5 + $0x38] sm:$0xff]
    %v2543 = vld [vmem:[%s5 + $0x40] sm:$0xff]
    %v2544 = vld [vmem:[%s5 + $0x48] sm:$0xff]
    %v2545 = vld [vmem:[%s5 + $0x50] sm:$0xff]
    %v2546 = vld [vmem:[%s5 + $0x58] sm:$0xff]
    %v2547 = vld [vmem:[%s5 + $0x60] sm:$0xff]
    %v2548 = vld [vmem:[%s5 + $0x68] sm:$0xff]
    %v2549 = vld [vmem:[%s5 + $0x70] sm:$0xff]
    %v2550 = vld [vmem:[%s5 + $0x78] sm:$0xff]
    %v2551 = vld [vmem:[%s5 + $0x80] sm:$0xff]
    %v2552 = vld [vmem:[%s5 + $0x88] sm:$0xff]
    %v2553 = vld [vmem:[%s5 + $0x90] sm:$0xff]
    %v2554 = vld [vmem:[%s5 + $0x98] sm:$0xff]
    %v2555 = vld [vmem:[%s5 + $0xa0] sm:$0xff]
    %v2556 = vld [vmem:[%s5 + $0xa8] sm:$0xff]
    %v2557 = vld [vmem:[%s5 + $0xb0] sm:$0xff]
    %v2558 = vld [vmem:[%s5 + $0xb8] sm:$0xff]
    %v2559 = vld [vmem:[%s5 + $0xc0] sm:$0xff]
    %v2560 = vld [vmem:[%s5 + $0xc8] sm:$0xff]
    %v2561 = vld [vmem:[%s5 + $0xd0] sm:$0xff]
    %v2562 = vld [vmem:[%s5 + $0xd8] sm:$0xff]
    %v2563 = vld [vmem:[%s5 + $0xe0] sm:$0xff]
    %v2564 = vld [vmem:[%s5 + $0xe8] sm:$0xff]
    %v2565 = vld [vmem:[%s5 + $0xf0] sm:$0xff]
    %v2566 = vld [vmem:[%s5 + $0xf8] sm:$0xff]
    %v2567 = vld [vmem:[%s5 + $0x100] sm:$0xff]
    %v2568 = vld [vmem:[%s5 + $0x108] sm:$0xff]
    %v2569 = vld [vmem:[%s5 + $0x110] sm:$0xff]
    %v2570 = vld [vmem:[%s5 + $0x118] sm:$0xff]
    %v2571 = vld [vmem:[%s5 + $0x120] sm:$0xff]
    %v2572 = vld [vmem:[%s5 + $0x128] sm:$0xff]
    %v2573 = vld [vmem:[%s5 + $0x130] sm:$0xff]
    %v2574 = vld [vmem:[%s5 + $0x138] sm:$0xff]
    %v2575 = vld [vmem:[%s5 + $0x140] sm:$0xff]
    %v2576 = vld [vmem:[%s5 + $0x148] sm:$0xff]
    %v2577 = vld [vmem:[%s5 + $0x150] sm:$0xff]
    %v2578 = vld [vmem:[%s5 + $0x158] sm:$0xff]
    %v2579 = vld [vmem:[%s5 + $0x160] sm:$0xff]
    %v2580 = vld [vmem:[%s5 + $0x168] sm:$0xff]
    %v2581 = vld [vmem:[%s5 + $0x170] sm:$0xff]
    %v2582 = vld [vmem:[%s5 + $0x178] sm:$0xff]
    %v2583 = vld [vmem:[%s5 + $0x180] sm:$0xff]
    %v2584 = vld [vmem:[%s5 + $0x188] sm:$0xff]
    %v2585 = vld [vmem:[%s5 + $0x190] sm:$0xff]
    %v2586 = vld [vmem:[%s5 + $0x198] sm:$0xff]
    %v2587 = vld [vmem:[%s5 + $0x1a0] sm:$0xff]
    %v2588 = vld [vmem:[%s5 + $0x1a8] sm:$0xff]
    %v2589 = vld [vmem:[%s5 + $0x1b0] sm:$0xff]
    %v2590 = vld [vmem:[%s5 + $0x1b8] sm:$0xff]
    %v2591 = vld [vmem:[%s5 + $0x1c0] sm:$0xff]
    %v2592 = vld [vmem:[%s5 + $0x1c8] sm:$0xff]
    %v2593 = vld [vmem:[%s5 + $0x1d0] sm:$0xff]
    %v2594 = vld [vmem:[%s5 + $0x1d8] sm:$0xff]
    %v2595 = vld [vmem:[%s5 + $0x1e0] sm:$0xff]
    %v2596 = vld [vmem:[%s5 + $0x1e8] sm:$0xff]
    %v2597 = vld [vmem:[%s5 + $0x1f0] sm:$0xff]
    %v2598 = vld [vmem:[%s5 + $0x1f8] sm:$0xff]
    %v2599 = vld [vmem:[%s6] sm:$0x1]
    %v2601 = vlaneseq
    %v2602 = vshrl.u32 %v2601, 7
    %v2603 = vsub.s32 0, %v2602
    %v2604 = vrot.slane %v2599, %v2603
    %2606 = vmatprep.subr.mxu0 0.0
    %2607 = vmatpush1.msra.mxu0 %v2535
    %2608 = vmatprep.subr.mxu0 0.0
    %2609 = vmatpush1.msra.mxu0 %v2536
    %2610 = vmatprep.subr.mxu0 0.0
    %2611 = vmatpush1.msra.mxu0 %v2537
    %2612 = vmatprep.subr.mxu0 0.0
    %2613 = vmatpush1.msra.mxu0 %v2538
    %2614 = vmatprep.subr.mxu0 0.0
    %2615 = vmatpush1.msra.mxu0 %v2539
    %2616 = vmatprep.subr.mxu0 0.0
    %2617 = vmatpush1.msra.mxu0 %v2540
    %2618 = vmatprep.subr.mxu0 0.0
    %2619 = vmatpush1.msra.mxu0 %v2541
    %2620 = vmatprep.subr.mxu0 0.0
    %2621 = vmatpush1.msra.mxu0 %v2542
    %2622 = vmatprep.subr.mxu0 0.0
    %2623 = vmatpush1.msra.mxu0 %v2543
    %2624 = vmatprep.subr.mxu0 0.0
    %2625 = vmatpush1.msra.mxu0 %v2544
    %2626 = vmatprep.subr.mxu0 0.0
    %2627 = vmatpush1.msra.mxu0 %v2545
    %2628 = vmatprep.subr.mxu0 0.0
    %2629 = vmatpush1.msra.mxu0 %v2546
    %2630 = vmatprep.subr.mxu0 0.0
    %2631 = vmatpush1.msra.mxu0 %v2547
    %2632 = vmatprep.subr.mxu0 0.0
    %2633 = vmatpush1.msra.mxu0 %v2548
    %2634 = vmatprep.subr.mxu0 0.0
    %2635 = vmatpush1.msra.mxu0 %v2549
    %2636 = vmatprep.subr.mxu0 0.0
    %2637 = vmatpush1.msra.mxu0 %v2550
    %2638 = vmatprep.subr.mxu0 0.0
    %2639 = vmatpush1.msra.mxu0 %v2551
    %2640 = vmatprep.subr.mxu0 0.0
    %2641 = vmatpush1.msra.mxu0 %v2552
    %2642 = vmatprep.subr.mxu0 0.0
    %2643 = vmatpush1.msra.mxu0 %v2553
    %2644 = vmatprep.subr.mxu0 0.0
    %2645 = vmatpush1.msra.mxu0 %v2554
    %2646 = vmatprep.subr.mxu0 0.0
    %2647 = vmatpush1.msra.mxu0 %v2555
    %2648 = vmatprep.subr.mxu0 0.0
    %2649 = vmatpush1.msra.mxu0 %v2556
    %2650 = vmatprep.subr.mxu0 0.0
    %2651 = vmatpush1.msra.mxu0 %v2557
    %2652 = vmatprep.subr.mxu0 0.0
    %2653 = vmatpush1.msra.mxu0 %v2558
    %2654 = vmatprep.subr.mxu0 0.0
    %2655 = vmatpush1.msra.mxu0 %v2559
    %2656 = vmatprep.subr.mxu0 0.0
    %2657 = vmatpush1.msra.mxu0 %v2560
    %2658 = vmatprep.subr.mxu0 0.0
    %2659 = vmatpush1.msra.mxu0 %v2561
    %2660 = vmatprep.subr.mxu0 0.0
    %2661 = vmatpush1.msra.mxu0 %v2562
    %2662 = vmatprep.subr.mxu0 0.0
    %2663 = vmatpush1.msra.mxu0 %v2563
    %2664 = vmatprep.subr.mxu0 0.0
    %2665 = vmatpush1.msra.mxu0 %v2564
    %2666 = vmatprep.subr.mxu0 0.0
    %2667 = vmatpush1.msra.mxu0 %v2565
    %2668 = vmatprep.subr.mxu0 0.0
    %2669 = vmatpush1.msra.mxu0 %v2566
    %2670 = vmatprep.mubr.f32.mxu0 %v2462
    %2671 = vmatmul.mubr.f32.gmra.mrb[0].mxu0 %v2460
    %v2672 = vpop.f32.mrb[0].mxu0
    %v2673 = vadd.f32 %v2604, %v2672
    %v2674 = vpop.f32.mrb[0].mxu0
    %2675 = vdwg.mxu0
    %2676 = vmatprep.subr.mxu0 0.0
    %2677 = vmatpush1.msra.mxu0 %v2567
    %2678 = vmatprep.subr.mxu0 0.0
    %2679 = vmatpush1.msra.mxu0 %v2568
    %2680 = vmatprep.subr.mxu0 0.0
    %2681 = vmatpush1.msra.mxu0 %v2569
    %2682 = vmatprep.subr.mxu0 0.0
    %2683 = vmatpush1.msra.mxu0 %v2570
    %2684 = vmatprep.subr.mxu0 0.0
    %2685 = vmatpush1.msra.mxu0 %v2571
    %2686 = vmatprep.subr.mxu0 0.0
    %2687 = vmatpush1.msra.mxu0 %v2572
    %2688 = vmatprep.subr.mxu0 0.0
    %2689 = vmatpush1.msra.mxu0 %v2573
    %2690 = vmatprep.subr.mxu0 0.0
    %2691 = vmatpush1.msra.mxu0 %v2574
    %2692 = vmatprep.subr.mxu0 0.0
    %2693 = vmatpush1.msra.mxu0 %v2575
    %2694 = vmatprep.subr.mxu0 0.0
    %2695 = vmatpush1.msra.mxu0 %v2576
    %2696 = vmatprep.subr.mxu0 0.0
    %2697 = vmatpush1.msra.mxu0 %v2577
    %2698 = vmatprep.subr.mxu0 0.0
    %2699 = vmatpush1.msra.mxu0 %v2578
    %2700 = vmatprep.subr.mxu0 0.0
    %2701 = vmatpush1.msra.mxu0 %v2579
    %2702 = vmatprep.subr.mxu0 0.0
    %2703 = vmatpush1.msra.mxu0 %v2580
    %2704 = vmatprep.subr.mxu0 0.0
    %2705 = vmatpush1.msra.mxu0 %v2581
    %2706 = vmatprep.subr.mxu0 0.0
    %2707 = vmatpush1.msra.mxu0 %v2582
    %2708 = vmatprep.subr.mxu0 0.0
    %2709 = vmatpush1.msra.mxu0 %v2583
    %2710 = vmatprep.subr.mxu0 0.0
    %2711 = vmatpush1.msra.mxu0 %v2584
    %2712 = vmatprep.subr.mxu0 0.0
    %2713 = vmatpush1.msra.mxu0 %v2585
    %2714 = vmatprep.subr.mxu0 0.0
    %2715 = vmatpush1.msra.mxu0 %v2586
    %2716 = vmatprep.subr.mxu0 0.0
    %2717 = vmatpush1.msra.mxu0 %v2587
    %2718 = vmatprep.subr.mxu0 0.0
    %2719 = vmatpush1.msra.mxu0 %v2588
    %2720 = vmatprep.subr.mxu0 0.0
    %2721 = vmatpush1.msra.mxu0 %v2589
    %2722 = vmatprep.subr.mxu0 0.0
    %2723 = vmatpush1.msra.mxu0 %v2590
    %2724 = vmatprep.subr.mxu0 0.0
    %2725 = vmatpush1.msra.mxu0 %v2591
    %2726 = vmatprep.subr.mxu0 0.0
    %2727 = vmatpush1.msra.mxu0 %v2592
    %2728 = vmatprep.subr.mxu0 0.0
    %2729 = vmatpush1.msra.mxu0 %v2593
    %2730 = vmatprep.subr.mxu0 0.0
    %2731 = vmatpush1.msra.mxu0 %v2594
    %2732 = vmatprep.subr.mxu0 0.0
    %2733 = vmatpush1.msra.mxu0 %v2595
    %2734 = vmatprep.subr.mxu0 0.0
    %2735 = vmatpush1.msra.mxu0 %v2596
    %2736 = vmatprep.subr.mxu0 0.0
    %2737 = vmatpush1.msra.mxu0 %v2597
    %2738 = vmatprep.subr.mxu0 0.0
    %2739 = vmatpush1.msra.mxu0 %v2598
    %2740 = vmatprep.mubr.f32.mxu0 %v2533
    %2741 = vmatmul.mubr.f32.gmra.mrb[0].mxu0 %v2531
    %v2742 = vpop.f32.mrb[0].mxu0
    %v2743 = vadd.f32 %v2673, %v2742
    %v2744 = vpop.f32.mrb[0].mxu0
    %2745 = vdwg.mxu0
    %vm2746 = vcmask 82944
    %2747 = vst.msk [vmem:[#allocation2] sm:$0x3] %vm2746, %v2743
    // Predicated region
    $region30: #{cnn_forward.1} parent=1 // pred_check
      _
    $region31: #{cnn_forward.1} parent=1 // pred_check_branch
      %2749 = sbr.rel (0) target = $region33
    $region32: #{cnn_forward.1} parent=1 // pred_region
      %s2751 = ssub.s32 32, 32
      %2752 = vsyncadd [#allocation3], %s2751
      %s2754 = sshll.u32 [#allocation2], 4
      %s2755 = int_to_ptr.vmem [resolvable:$true] %s2754
      %2757 = dma.vmem_to_hbm [thread:$0]  %s2755, 32, %s7, [#allocation3]
    $region33: #{cnn_forward.1} parent=1 // pred_fallthru
      _
    // Predicated region
    $region34: #{cnn_forward.1} parent=1 // pred_check
      _
    $region35: #{cnn_forward.1} parent=1 // pred_check_branch
      %2759 = sbr.rel (0) target = $region37
    $region36: #{cnn_forward.1} parent=1 // pred_region
      %2760 = dma.done [#allocation3], 32
    $region37: #{cnn_forward.1} parent=1 // pred_fallthru
      _
    %2761 = vsyncpa [#allocation3], 1

</llo_original>
